<compile_context>
chip_gen: v5e
topology: v5e:2x2
jax: 0.10.0
libtpu: 0.0.40
codegen_flags: <defaults>
</compile_context>

<pallas_src>
import jax
import jax.numpy as jnp
from jax import lax
from jax.experimental import pallas as pl
from jax.experimental.pallas import tpu as pltpu


# --------------------------------------------------------------------------- #
# Abstract base — mirrors the PyTorch module exactly (no compute).
# --------------------------------------------------------------------------- #
class GANDiscriminator:
    """Base class for discriminators (JAX port of the PyTorch base class)."""

    def __init__(self):
        pass

    @staticmethod
    def add_args(parser):
        """Add discriminator-specific arguments to the parser."""
        pass

    @classmethod
    def build_model(cls, args, task):
        """Build a new discriminator instance."""
        raise NotImplementedError(
            "GANDiscriminators must implement the build_model method")

    def forward(self, x):
        """
        Args:
            x: output from generator or targets.
        """
        # TODO(synk): reference forward() is abstract (raises NotImplementedError);
        # there is no concrete compute to translate at the base-class level.
        raise NotImplementedError

    def __call__(self, x):
        return self.forward(x)


# --------------------------------------------------------------------------- #
# Pallas kernel: fused 2-layer discriminator scoring head, K-tiled over F.
#   acc += x_blk(bf16) @ w1t_blk^T          (MXU, f32 accumulation)
#   on last K step:
#     h = leaky_relu(acc + b1, 0.2)          (VPU, f32)
#     y = sigmoid(sum(h * w2, -1) + b2)      (VPU mul + XLU lane reduce + EUP)
# Grid = (batch blocks, K blocks); K is the inner "arbitrary" reduction axis.
# --------------------------------------------------------------------------- #
def _disc_head_kernel(x_ref, w1t_ref, b1_ref, w2_ref, b2_ref, o_ref, acc_ref):
    k = pl.program_id(1)

    @pl.when(k == 0)
    def _():
        acc_ref[...] = jnp.zeros_like(acc_ref)

    # Cast activations to bf16 just before the MXU; accumulate in f32.
    x = x_ref[...].astype(jnp.bfloat16)                    # [TB, TK]
    w1t = w1t_ref[...]                                     # [H,  TK] bf16 (lane-dense)
    # Contract on F (last dim of both operands).
    # TODO(synk): confirm via pl.lower_as_mlir that this transposed-RHS
    # contraction lowers to a native MXU matmul (no per-tile XLU transpose);
    # if not, fall back to storing W1 as (F, H) and jnp.dot(x, w1).
    acc_ref[...] += lax.dot_general(
        x, w1t,
        dimension_numbers=(((1,), (1,)), ((), ())),
        preferred_element_type=jnp.float32)                # [TB, H] f32

    @pl.when(k == pl.num_programs(1) - 1)
    def _():
        h = acc_ref[...] + b1_ref[...]                     # broadcast (1, H)
        h = jnp.where(h > 0, h, 0.2 * h)                   # LeakyReLU(0.2), f32 VPU
        s = jnp.sum(h * w2_ref[...], axis=-1, keepdims=True) + b2_ref[0, 0]
        o_ref[...] = jax.nn.sigmoid(s).astype(o_ref.dtype)


def _pick_tk(feat, max_tk=8192):
    """Largest power-of-two K tile <= max_tk that evenly divides F; else whole F."""
    tk = max_tk
    while tk >= 128:
        if feat % tk == 0:
            return tk
        tk //= 2
    return feat   # F not a multiple of 128: single full-extent block (legal)


def disc_head_forward(x2d, w1t, b1, w2, b2):
    """x2d: [B, F] f32; w1t: [H, F] bf16; b1: [1, H] f32; w2: [1, H] f32; b2: [1, 1] f32."""
    B, F = x2d.shape
    H = w1t.shape[0]

    tk = _pick_tk(F)
    nk = F // tk

    # Batch tiling: single full block for small / non-aligned batches; tile to
    # 256-row blocks (marked "parallel" -> v7x 2nd TensorCore) when possible.
    if B > 256 and B % 256 == 0:
        tb = 256
    else:
        tb = B
    nb = B // tb

    # Deeper buffering on the streamed operands only when the K grid is deep
    # enough for it to matter (per-step compute is tiny vs per-step DMA).
    stream_kwargs = dict(pipeline_mode=pl.Buffered(3)) if nk >= 4 else {}

    x_spec = pl.BlockSpec((tb, tk), lambda b, k: (b, k), **stream_kwargs)
    w1t_spec = pl.BlockSpec((H, tk), lambda b, k: (0, k), **stream_kwargs)
    b1_spec = pl.BlockSpec((1, H), lambda b, k: (0, 0))
    w2_spec = pl.BlockSpec((1, H), lambda b, k: (0, 0))
    b2_spec = pl.BlockSpec(memory_space=pltpu.MemorySpace.SMEM)   # scalar bias
    out_spec = pl.BlockSpec((tb, 1), lambda b, k: (b, 0))

    cost = pl.CostEstimate(
        flops=2 * B * H * F,
        transcendentals=B,
        bytes_accessed=(B * F * x2d.dtype.itemsize     # activations (read once)
                        + H * F * 2                    # bf16 weights
                        + (2 * H + 1) * 4 + B * 4))    # biases + output

    out = pl.pallas_call(
        _disc_head_kernel,
        out_shape=jax.ShapeDtypeStruct((B, 1), jnp.float32),
        grid=(nb, nk),
        in_specs=[x_spec, w1t_spec, b1_spec, w2_spec, b2_spec],
        out_specs=out_spec,
        scratch_shapes=[pltpu.VMEM((tb, H), jnp.float32)],   # f32 accumulator
        compiler_params=pltpu.CompilerParams(
            dimension_semantics=("parallel", "arbitrary"),
            vmem_limit_bytes=32 * 1024 * 1024),
        cost_estimate=cost,
    )(x2d, w1t, b1, w2, b2)
    return out


class SimpleGANDiscriminator(GANDiscriminator):
    """Minimal concrete discriminator: flatten voxels -> MLP score in [0, 1]."""

    def __init__(self, in_features, hidden=32, key=None):
        super().__init__()
        if key is None:
            key = jax.random.PRNGKey(0)
        k1, k2 = jax.random.split(key)
        # W1 stored TRANSPOSED (hidden, in_features) in bf16: feature axis on
        # lanes -> dense HBM layout and dense per-step weight DMA.
        self.w1t = (jax.random.normal(k1, (hidden, in_features), jnp.float32)
                    * (1.0 / jnp.sqrt(in_features))).astype(jnp.bfloat16)
        self.b1 = jnp.zeros((1, hidden), jnp.float32)
        # Second layer weight kept as a (1, hidden) row vector (VPU/XLU path).
        self.w2 = (jax.random.normal(k2, (1, hidden), jnp.float32)
                   * (1.0 / jnp.sqrt(hidden)))
        self.b2 = jnp.zeros((1, 1), jnp.float32)

    @classmethod
    def build_model(cls, args, task):
        return cls(args["in_features"], args.get("hidden", 32))

    def forward(self, x):
        """x: voxel tensor [B, C, D, H, W] (NCDHW, like the PyTorch 3D-GAN)."""
        B = x.shape[0]
        # Flatten only (metadata reshape); no cast / pad in the wrapper — the
        # kernel casts to bf16 right before the MXU dot.
        x2d = x.reshape(B, -1)
        return disc_head_forward(x2d, self.w1t, self.b1, self.w2, self.b2)


# --------------------------------------------------------------------------- #
# Main
# --------------------------------------------------------------------------- #
if __name__ == "__main__":
    key = jax.random.PRNGKey(0)
    kx, kp = jax.random.split(key)

    # Small 3D-GAN style input: batch=2, channels=4, 16^3 voxels (NCDHW).
    # F = 4*16*16*16 = 16384 -> TK = 8192 -> 2 K-grid steps, exercising the
    # accumulator init / epilogue path.
    B, C, D, H, W = 2, 4, 16, 16, 16
    x = jax.random.normal(kx, (B, C, D, H, W), jnp.float32)

    disc = SimpleGANDiscriminator(in_features=C * D * H * W, hidden=32, key=kp)

    out = disc(x)
    out = jax.block_until_ready(out)

    # Reference check (pure JAX; same bf16 rounding of x / W1, f32 math otherwise).
    x2d_ref = x.reshape(B, -1).astype(jnp.bfloat16).astype(jnp.float32)
    w1_ref = disc.w1t.astype(jnp.float32).T
    h_ref = x2d_ref @ w1_ref + disc.b1
    h_ref = jnp.where(h_ref > 0, h_ref, 0.2 * h_ref)
    y_ref = jax.nn.sigmoid(
        jnp.sum(h_ref * disc.w2, axis=-1, keepdims=True) + disc.b2[0, 0])

    assert out.shape == (B, 1)
    assert jnp.allclose(out, y_ref, atol=5e-3, rtol=5e-3)

    print("KERNEL_OK")
</pallas_src>

<mosaic_0001>
module attributes {stable_mosaic.version = 11 : i64} {
  func.func @_disc_head_kernel(%arg0: i32, %arg1: i32, %arg2: memref<2x8192xf32, #tpu.memory_space<vmem>>, %arg3: memref<32x8192xbf16, #tpu.memory_space<vmem>>, %arg4: memref<1x32xf32, #tpu.memory_space<vmem>>, %arg5: memref<1x32xf32, #tpu.memory_space<vmem>>, %arg6: memref<1x1xf32, #tpu.memory_space<smem>>, %arg7: memref<2x1xf32, #tpu.memory_space<vmem>>, %arg8: memref<2x32xf32, #tpu.memory_space<vmem>>) attributes {dimension_semantics = [#tpu.dimension_semantics<parallel>, #tpu.dimension_semantics<arbitrary>], iteration_bounds = array<i64: 1, 2>, scalar_prefetch = 0 : i64, scratch_operands = 1 : i64, tpu.core_type = #tpu.core_type<tc>, window_params = [{transform_indices = @transform_0, window_bounds = array<i64: 2, 8192>}, {transform_indices = @transform_1, window_bounds = array<i64: 32, 8192>}, {pipeline_mode = #tpu.pipeline_mode<synchronous>, transform_indices = @transform_2, window_bounds = array<i64: 1, 32>}, {pipeline_mode = #tpu.pipeline_mode<synchronous>, transform_indices = @transform_3, window_bounds = array<i64: 1, 32>}, {transform_indices = @transform_4, window_bounds = array<i64: 1, 1>}, {transform_indices = @transform_5, window_bounds = array<i64: 2, 1>}]} {
    %c0_i32 = arith.constant 0 : i32
    %0 = arith.cmpi eq, %arg1, %c0_i32 : i32
    %1 = arith.extui %0 : i1 to i32
    %c0_i32_0 = arith.constant 0 : i32
    %2 = arith.cmpi ne, %1, %c0_i32_0 : i32
    scf.if %2 {
      %cst_9 = arith.constant 0.000000e+00 : f32
      %13 = vector.broadcast %cst_9 : f32 to vector<2x32xf32>
      %c0_10 = arith.constant 0 : index
      %c0_11 = arith.constant 0 : index
      %14 = vector.load %arg8[%c0_10, %c0_11] : memref<2x32xf32, #tpu.memory_space<vmem>>, vector<2x32xf32>
      tpu.vector_store %arg8[%c0_10, %c0_11], %13 {strides = array<i32>} : memref<2x32xf32, #tpu.memory_space<vmem>>, vector<2x32xf32>,
    } else {
    }
    %c0 = arith.constant 0 : index
    %c0_1 = arith.constant 0 : index
    %3 = vector.load %arg2[%c0, %c0_1] : memref<2x8192xf32, #tpu.memory_space<vmem>>, vector<2x8192xf32>
    %4 = arith.truncf %3 : vector<2x8192xf32> to vector<2x8192xbf16>
    %c0_2 = arith.constant 0 : index
    %c0_3 = arith.constant 0 : index
    %5 = vector.load %arg3[%c0_2, %c0_3] : memref<32x8192xbf16, #tpu.memory_space<vmem>>, vector<32x8192xbf16>
    %c0_4 = arith.constant 0 : index
    %c0_5 = arith.constant 0 : index
    %6 = vector.load %arg8[%c0_4, %c0_5] : memref<2x32xf32, #tpu.memory_space<vmem>>, vector<2x32xf32>
    %cst = arith.constant dense<0.000000e+00> : vector<2x32xf32>
    %7 = tpu.matmul %4, %5, %cst {dimension_numbers = #tpu.dot_dimension_numbers<[1], [1], [0], [0], [0, 0, 1, 0], [], []>} : vector<2x8192xbf16>, vector<32x8192xbf16>, vector<2x32xf32> -> vector<2x32xf32>
    %8 = arith.addf %6, %7 : vector<2x32xf32>
    %c0_6 = arith.constant 0 : index
    %c0_7 = arith.constant 0 : index
    %9 = vector.load %arg8[%c0_6, %c0_7] : memref<2x32xf32, #tpu.memory_space<vmem>>, vector<2x32xf32>
    tpu.vector_store %arg8[%c0_6, %c0_7], %8 {strides = array<i32>} : memref<2x32xf32, #tpu.memory_space<vmem>>, vector<2x32xf32>,
    %c1_i32 = arith.constant 1 : i32
    %10 = arith.cmpi eq, %arg1, %c1_i32 : i32
    %11 = arith.extui %10 : i1 to i32
    %c0_i32_8 = arith.constant 0 : i32
    %12 = arith.cmpi ne, %11, %c0_i32_8 : i32
    scf.if %12 {
      %c0_9 = arith.constant 0 : index
      %c0_10 = arith.constant 0 : index
      %13 = vector.load %arg8[%c0_9, %c0_10] : memref<2x32xf32, #tpu.memory_space<vmem>>, vector<2x32xf32>
      %c0_11 = arith.constant 0 : index
      %c0_12 = arith.constant 0 : index
      %14 = vector.load %arg4[%c0_11, %c0_12] : memref<1x32xf32, #tpu.memory_space<vmem>>, vector<1x32xf32>
      %15 = vector.broadcast %14 : vector<1x32xf32> to vector<2x32xf32>
      %16 = arith.addf %13, %15 : vector<2x32xf32>
      %cst_13 = arith.constant 0.000000e+00 : f32
      %17 = vector.broadcast %cst_13 : f32 to vector<2x32xf32>
      %18 = arith.cmpf ogt, %16, %17 : vector<2x32xf32>
      %cst_14 = arith.constant 2.000000e-01 : f32
      %19 = vector.broadcast %cst_14 : f32 to vector<2x32xf32>
      %20 = arith.mulf %19, %16 : vector<2x32xf32>
      %21 = arith.select %18, %16, %20 : vector<2x32xi1>, vector<2x32xf32>
      %c0_15 = arith.constant 0 : index
      %c0_16 = arith.constant 0 : index
      %22 = vector.load %arg5[%c0_15, %c0_16] : memref<1x32xf32, #tpu.memory_space<vmem>>, vector<1x32xf32>
      %23 = vector.broadcast %22 : vector<1x32xf32> to vector<2x32xf32>
      %24 = arith.mulf %21, %23 : vector<2x32xf32>
      %cst_17 = arith.constant dense<0.000000e+00> : vector<2xf32>
      %25 = vector.multi_reduction <add>, %24, %cst_17 [1] : vector<2x32xf32> to vector<2xf32>
      %26 = vector.shape_cast %25 : vector<2xf32> to vector<2x1xf32>
      %c0_18 = arith.constant 0 : index
      %c0_19 = arith.constant 0 : index
      %27 = memref.load %arg6[%c0_18, %c0_19] : memref<1x1xf32, #tpu.memory_space<smem>>
      %28 = vector.broadcast %27 : f32 to vector<2x1xf32>
      %29 = arith.addf %26, %28 : vector<2x1xf32>
      %30 = arith.negf %29 : vector<2x1xf32>
      %31 = math.exp %30 : vector<2x1xf32>
      %cst_20 = arith.constant 1.000000e+00 : f32
      %32 = vector.broadcast %cst_20 : f32 to vector<2x1xf32>
      %33 = arith.addf %32, %31 : vector<2x1xf32>
      %34 = arith.divf %32, %33 : vector<2x1xf32>
      %c0_21 = arith.constant 0 : index
      %c0_22 = arith.constant 0 : index
      %35 = vector.load %arg7[%c0_21, %c0_22] : memref<2x1xf32, #tpu.memory_space<vmem>>, vector<2x1xf32>
      tpu.vector_store %arg7[%c0_21, %c0_22], %34 {strides = array<i32>} : memref<2x1xf32, #tpu.memory_space<vmem>>, vector<2x1xf32>,
    } else {
    }
    return
  }
  func.func @transform_0(%arg0: i32, %arg1: i32) -> (i32, i32) {
    %c0_i32 = arith.constant 0 : i32
    return %arg0, %arg1 : i32, i32
  }
  func.func @transform_1(%arg0: i32, %arg1: i32) -> (i32, i32) {
    %c0_i32 = arith.constant 0 : i32
    %c0_i32_0 = arith.constant 0 : i32
    return %c0_i32, %arg1 : i32, i32
  }
  func.func @transform_2(%arg0: i32, %arg1: i32) -> (i32, i32) {
    %c0_i32 = arith.constant 0 : i32
    %c0_i32_0 = arith.constant 0 : i32
    %c0_i32_1 = arith.constant 0 : i32
    return %c0_i32, %c0_i32_0 : i32, i32
  }
  func.func @transform_3(%arg0: i32, %arg1: i32) -> (i32, i32) {
    %c0_i32 = arith.constant 0 : i32
    %c0_i32_0 = arith.constant 0 : i32
    %c0_i32_1 = arith.constant 0 : i32
    return %c0_i32, %c0_i32_0 : i32, i32
  }
  func.func @transform_4(%arg0: i32, %arg1: i32) -> (i32, i32) {
    %c0_i32 = arith.constant 0 : i32
    %c0_i32_0 = arith.constant 0 : i32
    %c0_i32_1 = arith.constant 0 : i32
    return %c0_i32, %c0_i32_0 : i32, i32
  }
  func.func @transform_5(%arg0: i32, %arg1: i32) -> (i32, i32) {
    %c0_i32 = arith.constant 0 : i32
    %c0_i32_0 = arith.constant 0 : i32
    return %arg0, %c0_i32 : i32, i32
  }
}

</mosaic_0001>

<llo_original>
// kernel: tpu_custom_call.1
$region0: #{tpu_custom_call.1}
  #allocation0 [shape = 'u32[]', space=smem, size = 0x4, offset = 0x4, fixed_abs, tag = 'smem constant byte address 0x4 - core index']
  #allocation1 [shape = 'u32[72,128]{1,0:T(1,128)}', space=vmem, size = 0x9000, scoped, tag = 'internal scratch']
  #allocation2 [shape = 'f32[2,32]{1,0:T(2,128)}', space=vmem, size = 0x400, scoped, tag = 'scratch operand']
  #allocation3 [shape = 'f32[1,1]{1,0:T(1,128)S(6)}', space=smem, size = 0x200, scoped, tag = 'scoped memory for tpu_custom_call.1']
  %s0 = inlined_call_operand.hbm [shape: f32[2,16384], index: 0, kind: input, shape index: {}]
  %s1 = inlined_call_operand.hbm [shape: bf16[32,16384], index: 1, kind: input, shape index: {}]
  %s2 = inlined_call_operand.vmem [shape: f32[1,32], index: 2, kind: input, shape index: {}]
  %s3 = inlined_call_operand.vmem [shape: f32[1,32], index: 3, kind: input, shape index: {}]
  %s4 = inlined_call_operand.<no memory space> [shape: f32[1,1], index: 4, kind: input, shape index: {}]
  %s5 = inlined_call_operand.vmem [shape: f32[2,1], index: 5, kind: output, shape index: {}]
  %s6 = sld [smem:[#allocation0]]
  $region69: #{tpu_custom_call.1} parent=0
    _
  %s8 = ssub.s32 1, %s6
  %s9 = scalar_select 0, %s8, %s6
  %10 = sst [smem:[#allocation3]] %s4
  $region1: #{tpu_custom_call.1} parent=0
    #allocation4 [shape = 'u8[131072]{0}', space=vmem, size = 0x20000, scoped, tag = 'input window, operand 0']
    #allocation5 [shape = 's32[2]{0}', space=sflag, size = 0x8, scoped, tag = 'scoped memory for tpu_custom_call.1']
    #allocation6 [shape = 'u8[1048576]{0}', space=vmem, size = 0x100000, scoped, tag = 'input window, operand 1']
    #allocation7 [shape = 's32[2]{0}', space=sflag, size = 0x8, scoped, tag = 'scoped memory for tpu_custom_call.1']
    %11 = vsyncpa [#allocation5], 0
    %s12 = scalar_lea.sflag [#allocation5], 1
    %13 = vsyncpa %s12, 0
    %14 = vsyncpa [#allocation7], 0
    %s15 = scalar_lea.sflag [#allocation7], 1
    %16 = vsyncpa %s15, 0
    loop: start=0, step=1, limit=4
    $region2: #{tpu_custom_call.1} parent=1 // loop_pre_header
      _
    $region3: #{tpu_custom_call.1} parent=1 // loop_header
      %s18 = sphi 0, %s22
      %p19 = scmp.ge.s32.totalorder %s18, 4
      %s25 = sphi 0, %s37
      %s26 = sphi 0, %s33
      %s27 = sphi 0, %s25
      %s28 = sphi 0, %s26
      %s29 = sphi 0, %s27
      %s30 = sphi 0, %s28
      %s42 = sphi 0, %s44
      %s45 = sphi 0, %s42
      %s46 = sphi 0, %s45
      %s62 = sphi 0, %s46
      %s68 = sphi 0, %s70
      %s71 = sphi 0, %s68
      %s72 = sphi 0, %s71
      %s88 = sphi 0, %s72
      %s92 = sphi 0, %s92
      %s94 = sphi 0, %s92
      %s95 = sphi 0, %s94
      %s109 = sphi 0, %s95
      %s113 = sphi 0, %s113
      %s115 = sphi 0, %s113
      %s116 = sphi 0, %s115
      %s130 = sphi 0, %s116
      %s134 = sphi 0, %s134
      %s136 = sphi 0, %s134
      %s137 = sphi 0, %s136
      %s151 = sphi 0, %s137
      %s157 = sphi 0, %s159
      %s160 = sphi 0, %s157
      %s161 = sphi 0, %s160
      %s177 = sphi 0, %s161
    $region4: #{tpu_custom_call.1} parent=1 // loop_header_branch
      %21 = sbr.rel (%p19) target = $region8
    $region5: #{tpu_custom_call.1} parent=1 // loop_body
      %s23 = ssub.s32 %s18, 1
      %s24 = ssub.s32 %s18, 2
      %s31 = sadd.s32 1, %s26
      %p32 = scmp.ge.s32.totalorder %s31, 2
      %s33 = scalar_select %p32, 0, %s31
      %s34 = sadd.s32 1, %s25
      %s35 = scalar_select %p32, %s34, %s25
      %p36 = scmp.ge.s32.totalorder %s35, 1
      %s37 = scalar_select %p36, 0, %s35
      %s38 = ssub.s32 %s25, %s37
      %s39 = ssub.s32 %s26, %s33
      %s40 = sor.u32 %s38, %s39
      %p41 = scmp.eq.s32.totalorder %s40, 0
      %s43 = sadd.s32 %s42, 1
      %s44 = scalar_select %p41, %s42, %s43
      %p47 = pneg %p41
      %p48 = scmp.eq.s32.totalorder %s18, 1
      %p49 = por %p47, %p48
      %p50 = scmp.ne.s32.totalorder %s42, %s45
      %p51 = scmp.eq.s32.totalorder %s18, 0
      %p52 = por %p50, %p51
      %p53 = scmp.ne.s32.totalorder %s42, %s45
      %p54 = scmp.eq.s32.totalorder %s23, 1
      %p55 = por %p53, %p54
      %p56 = scmp.ne.s32.totalorder %s45, %s46
      %p57 = scmp.eq.s32.totalorder %s23, 0
      %p58 = por %p56, %p57
      %p59 = scmp.ne.s32.totalorder %s45, %s46
      %p60 = scmp.eq.s32.totalorder %s24, 1
      %p61 = por %p59, %p60
      %p63 = scmp.ne.s32.totalorder %s46, %s62
      %p64 = scmp.eq.s32.totalorder %s24, 0
      %p65 = por %p63, %p64
      %s66 = ssub.s32 %s26, %s33
      %p67 = scmp.eq.s32.totalorder %s66, 0
      %s69 = sadd.s32 %s68, 1
      %s70 = scalar_select %p67, %s68, %s69
      %p73 = pneg %p67
      %p74 = scmp.eq.s32.totalorder %s18, 1
      %p75 = por %p73, %p74
      %p76 = scmp.ne.s32.totalorder %s68, %s71
      %p77 = scmp.eq.s32.totalorder %s18, 0
      %p78 = por %p76, %p77
      %p79 = scmp.ne.s32.totalorder %s68, %s71
      %p80 = scmp.eq.s32.totalorder %s23, 1
      %p81 = por %p79, %p80
      %p82 = scmp.ne.s32.totalorder %s71, %s72
      %p83 = scmp.eq.s32.totalorder %s23, 0
      %p84 = por %p82, %p83
      %p85 = scmp.ne.s32.totalorder %s71, %s72
      %p86 = scmp.eq.s32.totalorder %s24, 1
      %p87 = por %p85, %p86
      %p89 = scmp.ne.s32.totalorder %s72, %s88
      %p90 = scmp.eq.s32.totalorder %s24, 0
      %p91 = por %p89, %p90
      %s93 = sadd.s32 %s92, 1
      %p96 = scmp.eq.s32.totalorder %s18, 1
      %p97 = scmp.ne.s32.totalorder %s92, %s94
      %p98 = scmp.eq.s32.totalorder %s18, 0
      %p99 = por %p97, %p98
      %p100 = scmp.ne.s32.totalorder %s92, %s94
      %p101 = scmp.eq.s32.totalorder %s23, 1
      %p102 = por %p100, %p101
      %p103 = scmp.ne.s32.totalorder %s94, %s95
      %p104 = scmp.eq.s32.totalorder %s23, 0
      %p105 = por %p103, %p104
      %p106 = scmp.ne.s32.totalorder %s94, %s95
      %p107 = scmp.eq.s32.totalorder %s24, 1
      %p108 = por %p106, %p107
      %p110 = scmp.ne.s32.totalorder %s95, %s109
      %p111 = scmp.eq.s32.totalorder %s24, 0
      %p112 = por %p110, %p111
      %s114 = sadd.s32 %s113, 1
      %p117 = scmp.eq.s32.totalorder %s18, 1
      %p118 = scmp.ne.s32.totalorder %s113, %s115
      %p119 = scmp.eq.s32.totalorder %s18, 0
      %p120 = por %p118, %p119
      %p121 = scmp.ne.s32.totalorder %s113, %s115
      %p122 = scmp.eq.s32.totalorder %s23, 1
      %p123 = por %p121, %p122
      %p124 = scmp.ne.s32.totalorder %s115, %s116
      %p125 = scmp.eq.s32.totalorder %s23, 0
      %p126 = por %p124, %p125
      %p127 = scmp.ne.s32.totalorder %s115, %s116
      %p128 = scmp.eq.s32.totalorder %s24, 1
      %p129 = por %p127, %p128
      %p131 = scmp.ne.s32.totalorder %s116, %s130
      %p132 = scmp.eq.s32.totalorder %s24, 0
      %p133 = por %p131, %p132
      %s135 = sadd.s32 %s134, 1
      %p138 = scmp.eq.s32.totalorder %s18, 1
      %p139 = scmp.ne.s32.totalorder %s134, %s136
      %p140 = scmp.eq.s32.totalorder %s18, 0
      %p141 = por %p139, %p140
      %p142 = scmp.ne.s32.totalorder %s134, %s136
      %p143 = scmp.eq.s32.totalorder %s23, 1
      %p144 = por %p142, %p143
      %p145 = scmp.ne.s32.totalorder %s136, %s137
      %p146 = scmp.eq.s32.totalorder %s23, 0
      %p147 = por %p145, %p146
      %p148 = scmp.ne.s32.totalorder %s136, %s137
      %p149 = scmp.eq.s32.totalorder %s24, 1
      %p150 = por %p148, %p149
      %p152 = scmp.ne.s32.totalorder %s137, %s151
      %p153 = scmp.eq.s32.totalorder %s24, 0
      %p154 = por %p152, %p153
      %s155 = ssub.s32 %s25, %s37
      %p156 = scmp.eq.s32.totalorder %s155, 0
      %s158 = sadd.s32 %s157, 1
      %s159 = scalar_select %p156, %s157, %s158
      %p162 = pneg %p156
      %p163 = scmp.eq.s32.totalorder %s18, 1
      %p164 = por %p162, %p163
      %p165 = scmp.ne.s32.totalorder %s157, %s160
      %p166 = scmp.eq.s32.totalorder %s18, 0
      %p167 = por %p165, %p166
      %p168 = scmp.ne.s32.totalorder %s157, %s160
      %p169 = scmp.eq.s32.totalorder %s23, 1
      %p170 = por %p168, %p169
      %p171 = scmp.ne.s32.totalorder %s160, %s161
      %p172 = scmp.eq.s32.totalorder %s23, 0
      %p173 = por %p171, %p172
      %p174 = scmp.ne.s32.totalorder %s160, %s161
      %p175 = scmp.eq.s32.totalorder %s24, 1
      %p176 = por %p174, %p175
      %p178 = scmp.ne.s32.totalorder %s161, %s177
      %p179 = scmp.eq.s32.totalorder %s24, 0
      %p180 = por %p178, %p179
      %p181 = scmp.le.s32.totalorder 1, %s18
      %p182 = scmp.lt.s32.totalorder %s18, 3
      %p183 = pnand %p181, %p182
      %p184 = pneg %p183
      // Predicated region
      $region9: #{tpu_custom_call.1} parent=5 // pred_check
        _
      $region10: #{tpu_custom_call.1} parent=5 // pred_check_branch
        %186 = sbr.rel (%p183) target = $region12
      $region11: #{tpu_custom_call.1} parent=5 // pred_region
        %s187 = ssub.s32 %s18, 1
        // Predicated region
        $region13: #{tpu_custom_call.1} parent=11 // pred_check
          %p188 = pneg %p105
        $region14: #{tpu_custom_call.1} parent=11 // pred_check_branch
          %190 = sbr.rel (%p188) target = $region16
        $region15: #{tpu_custom_call.1} parent=11 // pred_region
          _
        $region16: #{tpu_custom_call.1} parent=11 // pred_fallthru
          _
        // Predicated region
        $region17: #{tpu_custom_call.1} parent=11 // pred_check
          %p191 = pneg %p126
        $region18: #{tpu_custom_call.1} parent=11 // pred_check_branch
          %193 = sbr.rel (%p191) target = $region20
        $region19: #{tpu_custom_call.1} parent=11 // pred_region
          _
        $region20: #{tpu_custom_call.1} parent=11 // pred_fallthru
          _
        // Predicated region
        $region21: #{tpu_custom_call.1} parent=11 // pred_check
          %p194 = pneg %p147
        $region22: #{tpu_custom_call.1} parent=11 // pred_check_branch
          %196 = sbr.rel (%p194) target = $region24
        $region23: #{tpu_custom_call.1} parent=11 // pred_region
          _
        $region24: #{tpu_custom_call.1} parent=11 // pred_fallthru
          _
      $region12: #{tpu_custom_call.1} parent=5 // pred_fallthru
        _
      %p197 = scmp.lt.s32.totalorder %s18, 2
      // Predicated region
      $region25: #{tpu_custom_call.1} parent=5 // pred_check
        %p198 = pneg %p197
      $region26: #{tpu_custom_call.1} parent=5 // pred_check_branch
        %200 = sbr.rel (%p198) target = $region28
      $region27: #{tpu_custom_call.1} parent=5 // pred_region
        // Predicated region
        $region29: #{tpu_custom_call.1} parent=27 // pred_check
          %p201 = pneg %p52
        $region30: #{tpu_custom_call.1} parent=27 // pred_check_branch
          %203 = sbr.rel (%p201) target = $region32
        $region31: #{tpu_custom_call.1} parent=27 // pred_region
          %s204 = sand.u32 %s42, 1
          %s205 = scalar_lea.sflag [#allocation5], %s204
          %s206 = sand.u32 %s42, 1
          %s207 = smul.addr %s206, 128
          %s208 = scalar_lea.vmem [#allocation4], %s207
          %s209 = smul.u32 64, %s26
          %211 = vsyncadd %s205, 0
          %s212 = smul.addr %s25, 128
          %s213 = sadd.s32 %s209, %s212
          %s214 = smul.addr %s213, 2
          %s215 = scalar_lea.hbm %s0, %s214
          %s217 = sshll.u32 %s215, 4
          %s218 = int_to_ptr.hbm [resolvable:$true] %s217
          %s219 = sshll.u32 %s208, 4
          %s220 = int_to_ptr.vmem [resolvable:$true] %s219
          %222 = dma.hbm_to_vmem [thread:$0]  %s218, 2048, %s220, %s205
        $region32: #{tpu_custom_call.1} parent=27 // pred_fallthru
          _
        // Predicated region
        $region33: #{tpu_custom_call.1} parent=27 // pred_check
          %p223 = pneg %p78
        $region34: #{tpu_custom_call.1} parent=27 // pred_check_branch
          %225 = sbr.rel (%p223) target = $region36
        $region35: #{tpu_custom_call.1} parent=27 // pred_region
          %s226 = sand.u32 %s68, 1
          %s227 = scalar_lea.sflag [#allocation7], %s226
          %s228 = sand.u32 %s68, 1
          %s229 = smul.addr %s228, 1024
          %s230 = scalar_lea.vmem [#allocation6], %s229
          %s231 = smul.u32 64, %s26
          %233 = vsyncadd %s227, 0
          %s234 = smul.addr %s231, 4
          %s235 = scalar_lea.hbm %s1, %s234
          %s236 = sshll.u32 %s235, 4
          %s237 = int_to_ptr.hbm [resolvable:$true] %s236
          %s238 = sshll.u32 %s230, 4
          %s239 = int_to_ptr.vmem [resolvable:$true] %s238
          %244 = dma.hbm_to_vmem [thread:$0]  %s237, 16384, %s239, %s227, 8192, 4096, 256
        $region36: #{tpu_custom_call.1} parent=27 // pred_fallthru
          _
      $region28: #{tpu_custom_call.1} parent=5 // pred_fallthru
        _
      %p245 = scmp.le.s32.totalorder 1, %s18
      %p246 = scmp.lt.s32.totalorder %s18, 3
      %p247 = pnand %p245, %p246
      %p248 = pneg %p247
      // Predicated region
      $region37: #{tpu_custom_call.1} parent=5 // pred_check
        _
      $region38: #{tpu_custom_call.1} parent=5 // pred_check_branch
        %250 = sbr.rel (%p247) target = $region40
      $region39: #{tpu_custom_call.1} parent=5 // pred_region
        %s251 = ssub.s32 %s18, 1
        %s252 = sand.u32 %s45, 1
        %s253 = scalar_lea.sflag [#allocation5], %s252
        %s254 = sand.u32 %s45, 1
        %s255 = smul.addr %s254, 128
        %s256 = scalar_lea.vmem [#allocation4], %s255
        // Predicated region
        $region41: #{tpu_custom_call.1} parent=39 // pred_check
          %p257 = pneg %p58
        $region42: #{tpu_custom_call.1} parent=39 // pred_check_branch
          %259 = sbr.rel (%p257) target = $region44
        $region43: #{tpu_custom_call.1} parent=39 // pred_region
          %261 = dma.done %s253, 2048
        $region44: #{tpu_custom_call.1} parent=39 // pred_fallthru
          _
        %s262 = sand.u32 %s71, 1
        %s263 = scalar_lea.sflag [#allocation7], %s262
        %s264 = sand.u32 %s71, 1
        %s265 = smul.addr %s264, 1024
        %s266 = scalar_lea.vmem [#allocation6], %s265
        // Predicated region
        $region45: #{tpu_custom_call.1} parent=39 // pred_check
          %p267 = pneg %p84
        $region46: #{tpu_custom_call.1} parent=39 // pred_check_branch
          %269 = sbr.rel (%p267) target = $region48
        $region47: #{tpu_custom_call.1} parent=39 // pred_region
          %271 = dma.done %s263, 16384
        $region48: #{tpu_custom_call.1} parent=39 // pred_fallthru
          _
        %s272 = sand.u32 %s45, 1
        %s273 = scalar_lea.sflag [#allocation5], %s272
        %s274 = sand.u32 %s45, 1
        %s275 = smul.addr %s274, 128
        %s276 = scalar_lea.vmem [#allocation4], %s275
        %p277 = pneg %p58
        %p278 = pneg %p55
        %s279 = sand.u32 %s71, 1
        %s280 = scalar_lea.sflag [#allocation7], %s279
        %s281 = sand.u32 %s71, 1
        %s282 = smul.addr %s281, 1024
        %s283 = scalar_lea.vmem [#allocation6], %s282
        %p284 = pneg %p84
        %p285 = pneg %p81
        %p286 = pneg %p105
        %p287 = pneg %p102
        %p288 = pneg %p126
        %p289 = pneg %p123
        %p290 = pneg %p147
        %p291 = pneg %p144
        %p292 = pneg %p173
        %p293 = pneg %p170
        %p294 = scmp.lt.s32.totalorder %s27, 0
        %s295 = scalar_select %p294, %s27, 0
        %s296 = smul.addr %s295, 2
        %s297 = scalar_lea.vmem %s5, %s296
        %s298 = smul.u32 64, %s28
        %s299 = smul.u32 64, %s28
        %p300 = scmp.lt.s32.totalorder %s27, 0
        %s301 = scalar_select %p300, %s27, 0
        %s302 = smul.addr %s301, 2
        %s303 = scalar_lea.vmem %s5, %s302
        %p305 = scmp.eq.s32.totalorder %s28, 0
        // Predicated region
        $region49: #{tpu_custom_call.1} parent=39 // pred_check
          %p306 = pneg %p305
        $region50: #{tpu_custom_call.1} parent=39 // pred_check_branch
          %308 = sbr.rel (%p306) target = $region52
        $region51: #{tpu_custom_call.1} parent=39 // pred_region
          %vm309 = vcmask 254976
          %310 = vst.msk [vmem:[#allocation2] sm:$0x3] %vm309, 0.0
        $region52: #{tpu_custom_call.1} parent=39 // pred_fallthru
          _
        %v311 = vld [vmem:[%s256] sm:$0xff]
        %v312 = vld [vmem:[%s256 + $0x8] sm:$0xff]
        %v313 = vld [vmem:[%s256 + $0x10] sm:$0xff]
        %v314 = vld [vmem:[%s256 + $0x18] sm:$0xff]
        %v315 = vld [vmem:[%s256 + $0x20] sm:$0xff]
        %v316 = vld [vmem:[%s256 + $0x28] sm:$0xff]
        %v317 = vld [vmem:[%s256 + $0x30] sm:$0xff]
        %v318 = vld [vmem:[%s256 + $0x38] sm:$0xff]
        %v319 = vld [vmem:[%s256 + $0x40] sm:$0xff]
        %v320 = vld [vmem:[%s256 + $0x48] sm:$0xff]
        %v321 = vld [vmem:[%s256 + $0x50] sm:$0xff]
        %v322 = vld [vmem:[%s256 + $0x58] sm:$0xff]
        %v323 = vld [vmem:[%s256 + $0x60] sm:$0xff]
        %v324 = vld [vmem:[%s256 + $0x68] sm:$0xff]
        %v325 = vld [vmem:[%s256 + $0x70] sm:$0xff]
        %v326 = vld [vmem:[%s256 + $0x78] sm:$0xff]
        %343 = vst [vmem:[#allocation1] ss:$4 sm:$0xff] %v311
        %s344 = scalar_lea.vmem [#allocation1], 32
        %345 = vst [vmem:[%s344] ss:$4 sm:$0xff] %v312
        %v346 = vld.sshfl [vmem:[#allocation1] sm:$0xff pattern:$0x73625140]
        %v347 = vld.sshfl [vmem:[#allocation1 + $0x8] sm:$0xff pattern:$0x73625140]
        %v348 = vld.sshfl [vmem:[#allocation1 + $0x10] sm:$0xff pattern:$0x73625140]
        %v349 = vld.sshfl [vmem:[#allocation1 + $0x18] sm:$0xff pattern:$0x73625140]
        %v350 = vld.sshfl [vmem:[#allocation1 + $0x20] sm:$0xff pattern:$0x73625140]
        %v351 = vld.sshfl [vmem:[#allocation1 + $0x28] sm:$0xff pattern:$0x73625140]
        %v352 = vld.sshfl [vmem:[#allocation1 + $0x30] sm:$0xff pattern:$0x73625140]
        %v353 = vld.sshfl [vmem:[#allocation1 + $0x38] sm:$0xff pattern:$0x73625140]
        %354 = vst [vmem:[#allocation1] ss:$4 sm:$0xff] %v313
        %355 = vst [vmem:[%s344] ss:$4 sm:$0xff] %v314
        %v356 = vld.sshfl [vmem:[#allocation1] sm:$0xff pattern:$0x73625140]
        %v357 = vld.sshfl [vmem:[#allocation1 + $0x8] sm:$0xff pattern:$0x73625140]
        %v358 = vld.sshfl [vmem:[#allocation1 + $0x10] sm:$0xff pattern:$0x73625140]
        %v359 = vld.sshfl [vmem:[#allocation1 + $0x18] sm:$0xff pattern:$0x73625140]
        %v360 = vld.sshfl [vmem:[#allocation1 + $0x20] sm:$0xff pattern:$0x73625140]
        %v361 = vld.sshfl [vmem:[#allocation1 + $0x28] sm:$0xff pattern:$0x73625140]
        %v362 = vld.sshfl [vmem:[#allocation1 + $0x30] sm:$0xff pattern:$0x73625140]
        %v363 = vld.sshfl [vmem:[#allocation1 + $0x38] sm:$0xff pattern:$0x73625140]
        %364 = vst [vmem:[#allocation1] ss:$4 sm:$0xff] %v315
        %365 = vst [vmem:[%s344] ss:$4 sm:$0xff] %v316
        %v366 = vld.sshfl [vmem:[#allocation1] sm:$0xff pattern:$0x73625140]
        %v367 = vld.sshfl [vmem:[#allocation1 + $0x8] sm:$0xff pattern:$0x73625140]
        %v368 = vld.sshfl [vmem:[#allocation1 + $0x10] sm:$0xff pattern:$0x73625140]
        %v369 = vld.sshfl [vmem:[#allocation1 + $0x18] sm:$0xff pattern:$0x73625140]
        %v370 = vld.sshfl [vmem:[#allocation1 + $0x20] sm:$0xff pattern:$0x73625140]
        %v371 = vld.sshfl [vmem:[#allocation1 + $0x28] sm:$0xff pattern:$0x73625140]
        %v372 = vld.sshfl [vmem:[#allocation1 + $0x30] sm:$0xff pattern:$0x73625140]
        %v373 = vld.sshfl [vmem:[#allocation1 + $0x38] sm:$0xff pattern:$0x73625140]
        %374 = vst [vmem:[#allocation1] ss:$4 sm:$0xff] %v317
        %375 = vst [vmem:[%s344] ss:$4 sm:$0xff] %v318
        %v376 = vld.sshfl [vmem:[#allocation1] sm:$0xff pattern:$0x73625140]
        %v377 = vld.sshfl [vmem:[#allocation1 + $0x8] sm:$0xff pattern:$0x73625140]
        %v378 = vld.sshfl [vmem:[#allocation1 + $0x10] sm:$0xff pattern:$0x73625140]
        %v379 = vld.sshfl [vmem:[#allocation1 + $0x18] sm:$0xff pattern:$0x73625140]
        %v380 = vld.sshfl [vmem:[#allocation1 + $0x20] sm:$0xff pattern:$0x73625140]
        %v381 = vld.sshfl [vmem:[#allocation1 + $0x28] sm:$0xff pattern:$0x73625140]
        %v382 = vld.sshfl [vmem:[#allocation1 + $0x30] sm:$0xff pattern:$0x73625140]
        %v383 = vld.sshfl [vmem:[#allocation1 + $0x38] sm:$0xff pattern:$0x73625140]
        %384 = vst [vmem:[#allocation1] ss:$4 sm:$0xff] %v319
        %385 = vst [vmem:[%s344] ss:$4 sm:$0xff] %v320
        %v386 = vld.sshfl [vmem:[#allocation1] sm:$0xff pattern:$0x73625140]
        %v387 = vld.sshfl [vmem:[#allocation1 + $0x8] sm:$0xff pattern:$0x73625140]
        %v388 = vld.sshfl [vmem:[#allocation1 + $0x10] sm:$0xff pattern:$0x73625140]
        %v389 = vld.sshfl [vmem:[#allocation1 + $0x18] sm:$0xff pattern:$0x73625140]
        %v390 = vld.sshfl [vmem:[#allocation1 + $0x20] sm:$0xff pattern:$0x73625140]
        %v391 = vld.sshfl [vmem:[#allocation1 + $0x28] sm:$0xff pattern:$0x73625140]
        %v392 = vld.sshfl [vmem:[#allocation1 + $0x30] sm:$0xff pattern:$0x73625140]
        %v393 = vld.sshfl [vmem:[#allocation1 + $0x38] sm:$0xff pattern:$0x73625140]
        %394 = vst [vmem:[#allocation1] ss:$4 sm:$0xff] %v321
        %395 = vst [vmem:[%s344] ss:$4 sm:$0xff] %v322
        %v396 = vld.sshfl [vmem:[#allocation1] sm:$0xff pattern:$0x73625140]
        %v397 = vld.sshfl [vmem:[#allocation1 + $0x8] sm:$0xff pattern:$0x73625140]
        %v398 = vld.sshfl [vmem:[#allocation1 + $0x10] sm:$0xff pattern:$0x73625140]
        %v399 = vld.sshfl [vmem:[#allocation1 + $0x18] sm:$0xff pattern:$0x73625140]
        %v400 = vld.sshfl [vmem:[#allocation1 + $0x20] sm:$0xff pattern:$0x73625140]
        %v401 = vld.sshfl [vmem:[#allocation1 + $0x28] sm:$0xff pattern:$0x73625140]
        %v402 = vld.sshfl [vmem:[#allocation1 + $0x30] sm:$0xff pattern:$0x73625140]
        %v403 = vld.sshfl [vmem:[#allocation1 + $0x38] sm:$0xff pattern:$0x73625140]
        %404 = vst [vmem:[#allocation1] ss:$4 sm:$0xff] %v323
        %405 = vst [vmem:[%s344] ss:$4 sm:$0xff] %v324
        %v406 = vld.sshfl [vmem:[#allocation1] sm:$0xff pattern:$0x73625140]
        %v407 = vld.sshfl [vmem:[#allocation1 + $0x8] sm:$0xff pattern:$0x73625140]
        %v408 = vld.sshfl [vmem:[#allocation1 + $0x10] sm:$0xff pattern:$0x73625140]
        %v409 = vld.sshfl [vmem:[#allocation1 + $0x18] sm:$0xff pattern:$0x73625140]
        %v410 = vld.sshfl [vmem:[#allocation1 + $0x20] sm:$0xff pattern:$0x73625140]
        %v411 = vld.sshfl [vmem:[#allocation1 + $0x28] sm:$0xff pattern:$0x73625140]
        %v412 = vld.sshfl [vmem:[#allocation1 + $0x30] sm:$0xff pattern:$0x73625140]
        %v413 = vld.sshfl [vmem:[#allocation1 + $0x38] sm:$0xff pattern:$0x73625140]
        %414 = vst [vmem:[#allocation1] ss:$4 sm:$0xff] %v325
        %415 = vst [vmem:[%s344] ss:$4 sm:$0xff] %v326
        %v416 = vld.sshfl [vmem:[#allocation1] sm:$0xff pattern:$0x73625140]
        %v417 = vld.sshfl [vmem:[#allocation1 + $0x8] sm:$0xff pattern:$0x73625140]
        %v418 = vld.sshfl [vmem:[#allocation1 + $0x10] sm:$0xff pattern:$0x73625140]
        %v419 = vld.sshfl [vmem:[#allocation1 + $0x18] sm:$0xff pattern:$0x73625140]
        %v420 = vld.sshfl [vmem:[#allocation1 + $0x20] sm:$0xff pattern:$0x73625140]
        %v421 = vld.sshfl [vmem:[#allocation1 + $0x28] sm:$0xff pattern:$0x73625140]
        %v422 = vld.sshfl [vmem:[#allocation1 + $0x30] sm:$0xff pattern:$0x73625140]
        %v423 = vld.sshfl [vmem:[#allocation1 + $0x38] sm:$0xff pattern:$0x73625140]
        %v488 = vpack.c.bf16 %v346, %v346
        %v489 = vpack.c.bf16 %v347, %v347
        %v490 = vpack.c.bf16 %v348, %v348
        %v491 = vpack.c.bf16 %v349, %v349
        %v492 = vpack.c.bf16 %v350, %v350
        %v493 = vpack.c.bf16 %v351, %v351
        %v494 = vpack.c.bf16 %v352, %v352
        %v495 = vpack.c.bf16 %v353, %v353
        %v496 = vpack.c.bf16 %v356, %v356
        %v497 = vpack.c.bf16 %v357, %v357
        %v498 = vpack.c.bf16 %v358, %v358
        %v499 = vpack.c.bf16 %v359, %v359
        %v500 = vpack.c.bf16 %v360, %v360
        %v501 = vpack.c.bf16 %v361, %v361
        %v502 = vpack.c.bf16 %v362, %v362
        %v503 = vpack.c.bf16 %v363, %v363
        %v504 = vpack.c.bf16 %v366, %v366
        %v505 = vpack.c.bf16 %v367, %v367
        %v506 = vpack.c.bf16 %v368, %v368
        %v507 = vpack.c.bf16 %v369, %v369
        %v508 = vpack.c.bf16 %v370, %v370
        %v509 = vpack.c.bf16 %v371, %v371
        %v510 = vpack.c.bf16 %v372, %v372
        %v511 = vpack.c.bf16 %v373, %v373
        %v512 = vpack.c.bf16 %v376, %v376
        %v513 = vpack.c.bf16 %v377, %v377
        %v514 = vpack.c.bf16 %v378, %v378
        %v515 = vpack.c.bf16 %v379, %v379
        %v516 = vpack.c.bf16 %v380, %v380
        %v517 = vpack.c.bf16 %v381, %v381
        %v518 = vpack.c.bf16 %v382, %v382
        %v519 = vpack.c.bf16 %v383, %v383
        %v520 = vpack.c.bf16 %v386, %v386
        %v521 = vpack.c.bf16 %v387, %v387
        %v522 = vpack.c.bf16 %v388, %v388
        %v523 = vpack.c.bf16 %v389, %v389
        %v524 = vpack.c.bf16 %v390, %v390
        %v525 = vpack.c.bf16 %v391, %v391
        %v526 = vpack.c.bf16 %v392, %v392
        %v527 = vpack.c.bf16 %v393, %v393
        %v528 = vpack.c.bf16 %v396, %v396
        %v529 = vpack.c.bf16 %v397, %v397
        %v530 = vpack.c.bf16 %v398, %v398
        %v531 = vpack.c.bf16 %v399, %v399
        %v532 = vpack.c.bf16 %v400, %v400
        %v533 = vpack.c.bf16 %v401, %v401
        %v534 = vpack.c.bf16 %v402, %v402
        %v535 = vpack.c.bf16 %v403, %v403
        %v536 = vpack.c.bf16 %v406, %v406
        %v537 = vpack.c.bf16 %v407, %v407
        %v538 = vpack.c.bf16 %v408, %v408
        %v539 = vpack.c.bf16 %v409, %v409
        %v540 = vpack.c.bf16 %v410, %v410
        %v541 = vpack.c.bf16 %v411, %v411
        %v542 = vpack.c.bf16 %v412, %v412
        %v543 = vpack.c.bf16 %v413, %v413
        %v544 = vpack.c.bf16 %v416, %v416
        %v545 = vpack.c.bf16 %v417, %v417
        %v546 = vpack.c.bf16 %v418, %v418
        %v547 = vpack.c.bf16 %v419, %v419
        %v548 = vpack.c.bf16 %v420, %v420
        %v549 = vpack.c.bf16 %v421, %v421
        %v550 = vpack.c.bf16 %v422, %v422
        %v551 = vpack.c.bf16 %v423, %v423
        %v552 = vld [vmem:[%s266] sm:$0xff]
        %v553 = vld [vmem:[%s266 + $0x8] sm:$0xff]
        %v554 = vld [vmem:[%s266 + $0x10] sm:$0xff]
        %v555 = vld [vmem:[%s266 + $0x18] sm:$0xff]
        %v556 = vld [vmem:[%s266 + $0x20] sm:$0xff]
        %v557 = vld [vmem:[%s266 + $0x28] sm:$0xff]
        %v558 = vld [vmem:[%s266 + $0x30] sm:$0xff]
        %v559 = vld [vmem:[%s266 + $0x38] sm:$0xff]
        %v560 = vld [vmem:[%s266 + $0x40] sm:$0xff]
        %v561 = vld [vmem:[%s266 + $0x48] sm:$0xff]
        %v562 = vld [vmem:[%s266 + $0x50] sm:$0xff]
        %v563 = vld [vmem:[%s266 + $0x58] sm:$0xff]
        %v564 = vld [vmem:[%s266 + $0x60] sm:$0xff]
        %v565 = vld [vmem:[%s266 + $0x68] sm:$0xff]
        %v566 = vld [vmem:[%s266 + $0x70] sm:$0xff]
        %v567 = vld [vmem:[%s266 + $0x78] sm:$0xff]
        %v568 = vld [vmem:[%s266 + $0x80] sm:$0xff]
        %v569 = vld [vmem:[%s266 + $0x88] sm:$0xff]
        %v570 = vld [vmem:[%s266 + $0x90] sm:$0xff]
        %v571 = vld [vmem:[%s266 + $0x98] sm:$0xff]
        %v572 = vld [vmem:[%s266 + $0xa0] sm:$0xff]
        %v573 = vld [vmem:[%s266 + $0xa8] sm:$0xff]
        %v574 = vld [vmem:[%s266 + $0xb0] sm:$0xff]
        %v575 = vld [vmem:[%s266 + $0xb8] sm:$0xff]
        %v576 = vld [vmem:[%s266 + $0xc0] sm:$0xff]
        %v577 = vld [vmem:[%s266 + $0xc8] sm:$0xff]
        %v578 = vld [vmem:[%s266 + $0xd0] sm:$0xff]
        %v579 = vld [vmem:[%s266 + $0xd8] sm:$0xff]
        %v580 = vld [vmem:[%s266 + $0xe0] sm:$0xff]
        %v581 = vld [vmem:[%s266 + $0xe8] sm:$0xff]
        %v582 = vld [vmem:[%s266 + $0xf0] sm:$0xff]
        %v583 = vld [vmem:[%s266 + $0xf8] sm:$0xff]
        %v584 = vld [vmem:[%s266 + $0x100] sm:$0xff]
        %v585 = vld [vmem:[%s266 + $0x108] sm:$0xff]
        %v586 = vld [vmem:[%s266 + $0x110] sm:$0xff]
        %v587 = vld [vmem:[%s266 + $0x118] sm:$0xff]
        %v588 = vld [vmem:[%s266 + $0x120] sm:$0xff]
        %v589 = vld [vmem:[%s266 + $0x128] sm:$0xff]
        %v590 = vld [vmem:[%s266 + $0x130] sm:$0xff]
        %v591 = vld [vmem:[%s266 + $0x138] sm:$0xff]
        %v592 = vld [vmem:[%s266 + $0x140] sm:$0xff]
        %v593 = vld [vmem:[%s266 + $0x148] sm:$0xff]
        %v594 = vld [vmem:[%s266 + $0x150] sm:$0xff]
        %v595 = vld [vmem:[%s266 + $0x158] sm:$0xff]
        %v596 = vld [vmem:[%s266 + $0x160] sm:$0xff]
        %v597 = vld [vmem:[%s266 + $0x168] sm:$0xff]
        %v598 = vld [vmem:[%s266 + $0x170] sm:$0xff]
        %v599 = vld [vmem:[%s266 + $0x178] sm:$0xff]
        %v600 = vld [vmem:[%s266 + $0x180] sm:$0xff]
        %v601 = vld [vmem:[%s266 + $0x188] sm:$0xff]
        %v602 = vld [vmem:[%s266 + $0x190] sm:$0xff]
        %v603 = vld [vmem:[%s266 + $0x198] sm:$0xff]
        %v604 = vld [vmem:[%s266 + $0x1a0] sm:$0xff]
        %v605 = vld [vmem:[%s266 + $0x1a8] sm:$0xff]
        %v606 = vld [vmem:[%s266 + $0x1b0] sm:$0xff]
        %v607 = vld [vmem:[%s266 + $0x1b8] sm:$0xff]
        %v608 = vld [vmem:[%s266 + $0x1c0] sm:$0xff]
        %v609 = vld [vmem:[%s266 + $0x1c8] sm:$0xff]
        %v610 = vld [vmem:[%s266 + $0x1d0] sm:$0xff]
        %v611 = vld [vmem:[%s266 + $0x1d8] sm:$0xff]
        %v612 = vld [vmem:[%s266 + $0x1e0] sm:$0xff]
        %v613 = vld [vmem:[%s266 + $0x1e8] sm:$0xff]
        %v614 = vld [vmem:[%s266 + $0x1f0] sm:$0xff]
        %v615 = vld [vmem:[%s266 + $0x1f8] sm:$0xff]
        %v616 = vld [vmem:[%s266 + $0x200] sm:$0xff]
        %v617 = vld [vmem:[%s266 + $0x208] sm:$0xff]
        %v618 = vld [vmem:[%s266 + $0x210] sm:$0xff]
        %v619 = vld [vmem:[%s266 + $0x218] sm:$0xff]
        %v620 = vld [vmem:[%s266 + $0x220] sm:$0xff]
        %v621 = vld [vmem:[%s266 + $0x228] sm:$0xff]
        %v622 = vld [vmem:[%s266 + $0x230] sm:$0xff]
        %v623 = vld [vmem:[%s266 + $0x238] sm:$0xff]
        %v624 = vld [vmem:[%s266 + $0x240] sm:$0xff]
        %v625 = vld [vmem:[%s266 + $0x248] sm:$0xff]
        %v626 = vld [vmem:[%s266 + $0x250] sm:$0xff]
        %v627 = vld [vmem:[%s266 + $0x258] sm:$0xff]
        %v628 = vld [vmem:[%s266 + $0x260] sm:$0xff]
        %v629 = vld [vmem:[%s266 + $0x268] sm:$0xff]
        %v630 = vld [vmem:[%s266 + $0x270] sm:$0xff]
        %v631 = vld [vmem:[%s266 + $0x278] sm:$0xff]
        %v632 = vld [vmem:[%s266 + $0x280] sm:$0xff]
        %v633 = vld [vmem:[%s266 + $0x288] sm:$0xff]
        %v634 = vld [vmem:[%s266 + $0x290] sm:$0xff]
        %v635 = vld [vmem:[%s266 + $0x298] sm:$0xff]
        %v636 = vld [vmem:[%s266 + $0x2a0] sm:$0xff]
        %v637 = vld [vmem:[%s266 + $0x2a8] sm:$0xff]
        %v638 = vld [vmem:[%s266 + $0x2b0] sm:$0xff]
        %v639 = vld [vmem:[%s266 + $0x2b8] sm:$0xff]
        %v640 = vld [vmem:[%s266 + $0x2c0] sm:$0xff]
        %v641 = vld [vmem:[%s266 + $0x2c8] sm:$0xff]
        %v642 = vld [vmem:[%s266 + $0x2d0] sm:$0xff]
        %v643 = vld [vmem:[%s266 + $0x2d8] sm:$0xff]
        %v644 = vld [vmem:[%s266 + $0x2e0] sm:$0xff]
        %v645 = vld [vmem:[%s266 + $0x2e8] sm:$0xff]
        %v646 = vld [vmem:[%s266 + $0x2f0] sm:$0xff]
        %v647 = vld [vmem:[%s266 + $0x2f8] sm:$0xff]
        %v648 = vld [vmem:[%s266 + $0x300] sm:$0xff]
        %v649 = vld [vmem:[%s266 + $0x308] sm:$0xff]
        %v650 = vld [vmem:[%s266 + $0x310] sm:$0xff]
        %v651 = vld [vmem:[%s266 + $0x318] sm:$0xff]
        %v652 = vld [vmem:[%s266 + $0x320] sm:$0xff]
        %v653 = vld [vmem:[%s266 + $0x328] sm:$0xff]
        %v654 = vld [vmem:[%s266 + $0x330] sm:$0xff]
        %v655 = vld [vmem:[%s266 + $0x338] sm:$0xff]
        %v656 = vld [vmem:[%s266 + $0x340] sm:$0xff]
        %v657 = vld [vmem:[%s266 + $0x348] sm:$0xff]
        %v658 = vld [vmem:[%s266 + $0x350] sm:$0xff]
        %v659 = vld [vmem:[%s266 + $0x358] sm:$0xff]
        %v660 = vld [vmem:[%s266 + $0x360] sm:$0xff]
        %v661 = vld [vmem:[%s266 + $0x368] sm:$0xff]
        %v662 = vld [vmem:[%s266 + $0x370] sm:$0xff]
        %v663 = vld [vmem:[%s266 + $0x378] sm:$0xff]
        %v664 = vld [vmem:[%s266 + $0x380] sm:$0xff]
        %v665 = vld [vmem:[%s266 + $0x388] sm:$0xff]
        %v666 = vld [vmem:[%s266 + $0x390] sm:$0xff]
        %v667 = vld [vmem:[%s266 + $0x398] sm:$0xff]
        %v668 = vld [vmem:[%s266 + $0x3a0] sm:$0xff]
        %v669 = vld [vmem:[%s266 + $0x3a8] sm:$0xff]
        %v670 = vld [vmem:[%s266 + $0x3b0] sm:$0xff]
        %v671 = vld [vmem:[%s266 + $0x3b8] sm:$0xff]
        %v672 = vld [vmem:[%s266 + $0x3c0] sm:$0xff]
        %v673 = vld [vmem:[%s266 + $0x3c8] sm:$0xff]
        %v674 = vld [vmem:[%s266 + $0x3d0] sm:$0xff]
        %v675 = vld [vmem:[%s266 + $0x3d8] sm:$0xff]
        %v676 = vld [vmem:[%s266 + $0x3e0] sm:$0xff]
        %v677 = vld [vmem:[%s266 + $0x3e8] sm:$0xff]
        %v678 = vld [vmem:[%s266 + $0x3f0] sm:$0xff]
        %v679 = vld [vmem:[%s266 + $0x3f8] sm:$0xff]
        %v680 = vld [vmem:[#allocation2] sm:$0x3]
        %v809 = vunpack.c.l.b16 %v552
        %v810 = vunpack.c.h.b16 %v552
        %v811 = vunpack.c.l.b16 %v553
        %v812 = vunpack.c.h.b16 %v553
        %v813 = vunpack.c.l.b16 %v554
        %v814 = vunpack.c.h.b16 %v554
        %v815 = vunpack.c.l.b16 %v555
        %v816 = vunpack.c.h.b16 %v555
        %v817 = vunpack.c.l.b16 %v556
        %v818 = vunpack.c.h.b16 %v556
        %v819 = vunpack.c.l.b16 %v557
        %v820 = vunpack.c.h.b16 %v557
        %v821 = vunpack.c.l.b16 %v558
        %v822 = vunpack.c.h.b16 %v558
        %v823 = vunpack.c.l.b16 %v559
        %v824 = vunpack.c.h.b16 %v559
        %v825 = vunpack.c.l.b16 %v560
        %v826 = vunpack.c.h.b16 %v560
        %v827 = vunpack.c.l.b16 %v561
        %v828 = vunpack.c.h.b16 %v561
        %v829 = vunpack.c.l.b16 %v562
        %v830 = vunpack.c.h.b16 %v562
        %v831 = vunpack.c.l.b16 %v563
        %v832 = vunpack.c.h.b16 %v563
        %v833 = vunpack.c.l.b16 %v564
        %v834 = vunpack.c.h.b16 %v564
        %v835 = vunpack.c.l.b16 %v565
        %v836 = vunpack.c.h.b16 %v565
        %v837 = vunpack.c.l.b16 %v566
        %v838 = vunpack.c.h.b16 %v566
        %v839 = vunpack.c.l.b16 %v567
        %v840 = vunpack.c.h.b16 %v567
        %v841 = vunpack.c.l.b16 %v568
        %v842 = vunpack.c.h.b16 %v568
        %v843 = vunpack.c.l.b16 %v569
        %v844 = vunpack.c.h.b16 %v569
        %v845 = vunpack.c.l.b16 %v570
        %v846 = vunpack.c.h.b16 %v570
        %v847 = vunpack.c.l.b16 %v571
        %v848 = vunpack.c.h.b16 %v571
        %v849 = vunpack.c.l.b16 %v572
        %v850 = vunpack.c.h.b16 %v572
        %v851 = vunpack.c.l.b16 %v573
        %v852 = vunpack.c.h.b16 %v573
        %v853 = vunpack.c.l.b16 %v574
        %v854 = vunpack.c.h.b16 %v574
        %v855 = vunpack.c.l.b16 %v575
        %v856 = vunpack.c.h.b16 %v575
        %v857 = vunpack.c.l.b16 %v576
        %v858 = vunpack.c.h.b16 %v576
        %v859 = vunpack.c.l.b16 %v577
        %v860 = vunpack.c.h.b16 %v577
        %v861 = vunpack.c.l.b16 %v578
        %v862 = vunpack.c.h.b16 %v578
        %v863 = vunpack.c.l.b16 %v579
        %v864 = vunpack.c.h.b16 %v579
        %v865 = vunpack.c.l.b16 %v580
        %v866 = vunpack.c.h.b16 %v580
        %v867 = vunpack.c.l.b16 %v581
        %v868 = vunpack.c.h.b16 %v581
        %v869 = vunpack.c.l.b16 %v582
        %v870 = vunpack.c.h.b16 %v582
        %v871 = vunpack.c.l.b16 %v583
        %v872 = vunpack.c.h.b16 %v583
        %v873 = vunpack.c.l.b16 %v584
        %v874 = vunpack.c.h.b16 %v584
        %v875 = vunpack.c.l.b16 %v585
        %v876 = vunpack.c.h.b16 %v585
        %v877 = vunpack.c.l.b16 %v586
        %v878 = vunpack.c.h.b16 %v586
        %v879 = vunpack.c.l.b16 %v587
        %v880 = vunpack.c.h.b16 %v587
        %v881 = vunpack.c.l.b16 %v588
        %v882 = vunpack.c.h.b16 %v588
        %v883 = vunpack.c.l.b16 %v589
        %v884 = vunpack.c.h.b16 %v589
        %v885 = vunpack.c.l.b16 %v590
        %v886 = vunpack.c.h.b16 %v590
        %v887 = vunpack.c.l.b16 %v591
        %v888 = vunpack.c.h.b16 %v591
        %v889 = vunpack.c.l.b16 %v592
        %v890 = vunpack.c.h.b16 %v592
        %v891 = vunpack.c.l.b16 %v593
        %v892 = vunpack.c.h.b16 %v593
        %v893 = vunpack.c.l.b16 %v594
        %v894 = vunpack.c.h.b16 %v594
        %v895 = vunpack.c.l.b16 %v595
        %v896 = vunpack.c.h.b16 %v595
        %v897 = vunpack.c.l.b16 %v596
        %v898 = vunpack.c.h.b16 %v596
        %v899 = vunpack.c.l.b16 %v597
        %v900 = vunpack.c.h.b16 %v597
        %v901 = vunpack.c.l.b16 %v598
        %v902 = vunpack.c.h.b16 %v598
        %v903 = vunpack.c.l.b16 %v599
        %v904 = vunpack.c.h.b16 %v599
        %v905 = vunpack.c.l.b16 %v600
        %v906 = vunpack.c.h.b16 %v600
        %v907 = vunpack.c.l.b16 %v601
        %v908 = vunpack.c.h.b16 %v601
        %v909 = vunpack.c.l.b16 %v602
        %v910 = vunpack.c.h.b16 %v602
        %v911 = vunpack.c.l.b16 %v603
        %v912 = vunpack.c.h.b16 %v603
        %v913 = vunpack.c.l.b16 %v604
        %v914 = vunpack.c.h.b16 %v604
        %v915 = vunpack.c.l.b16 %v605
        %v916 = vunpack.c.h.b16 %v605
        %v917 = vunpack.c.l.b16 %v606
        %v918 = vunpack.c.h.b16 %v606
        %v919 = vunpack.c.l.b16 %v607
        %v920 = vunpack.c.h.b16 %v607
        %v921 = vunpack.c.l.b16 %v608
        %v922 = vunpack.c.h.b16 %v608
        %v923 = vunpack.c.l.b16 %v609
        %v924 = vunpack.c.h.b16 %v609
        %v925 = vunpack.c.l.b16 %v610
        %v926 = vunpack.c.h.b16 %v610
        %v927 = vunpack.c.l.b16 %v611
        %v928 = vunpack.c.h.b16 %v611
        %v929 = vunpack.c.l.b16 %v612
        %v930 = vunpack.c.h.b16 %v612
        %v931 = vunpack.c.l.b16 %v613
        %v932 = vunpack.c.h.b16 %v613
        %v933 = vunpack.c.l.b16 %v614
        %v934 = vunpack.c.h.b16 %v614
        %v935 = vunpack.c.l.b16 %v615
        %v936 = vunpack.c.h.b16 %v615
        %v937 = vunpack.c.l.b16 %v616
        %v938 = vunpack.c.h.b16 %v616
        %v939 = vunpack.c.l.b16 %v617
        %v940 = vunpack.c.h.b16 %v617
        %v941 = vunpack.c.l.b16 %v618
        %v942 = vunpack.c.h.b16 %v618
        %v943 = vunpack.c.l.b16 %v619
        %v944 = vunpack.c.h.b16 %v619
        %v945 = vunpack.c.l.b16 %v620
        %v946 = vunpack.c.h.b16 %v620
        %v947 = vunpack.c.l.b16 %v621
        %v948 = vunpack.c.h.b16 %v621
        %v949 = vunpack.c.l.b16 %v622
        %v950 = vunpack.c.h.b16 %v622
        %v951 = vunpack.c.l.b16 %v623
        %v952 = vunpack.c.h.b16 %v623
        %v953 = vunpack.c.l.b16 %v624
        %v954 = vunpack.c.h.b16 %v624
        %v955 = vunpack.c.l.b16 %v625
        %v956 = vunpack.c.h.b16 %v625
        %v957 = vunpack.c.l.b16 %v626
        %v958 = vunpack.c.h.b16 %v626
        %v959 = vunpack.c.l.b16 %v627
        %v960 = vunpack.c.h.b16 %v627
        %v961 = vunpack.c.l.b16 %v628
        %v962 = vunpack.c.h.b16 %v628
        %v963 = vunpack.c.l.b16 %v629
        %v964 = vunpack.c.h.b16 %v629
        %v965 = vunpack.c.l.b16 %v630
        %v966 = vunpack.c.h.b16 %v630
        %v967 = vunpack.c.l.b16 %v631
        %v968 = vunpack.c.h.b16 %v631
        %v969 = vunpack.c.l.b16 %v632
        %v970 = vunpack.c.h.b16 %v632
        %v971 = vunpack.c.l.b16 %v633
        %v972 = vunpack.c.h.b16 %v633
        %v973 = vunpack.c.l.b16 %v634
        %v974 = vunpack.c.h.b16 %v634
        %v975 = vunpack.c.l.b16 %v635
        %v976 = vunpack.c.h.b16 %v635
        %v977 = vunpack.c.l.b16 %v636
        %v978 = vunpack.c.h.b16 %v636
        %v979 = vunpack.c.l.b16 %v637
        %v980 = vunpack.c.h.b16 %v637
        %v981 = vunpack.c.l.b16 %v638
        %v982 = vunpack.c.h.b16 %v638
        %v983 = vunpack.c.l.b16 %v639
        %v984 = vunpack.c.h.b16 %v639
        %v985 = vunpack.c.l.b16 %v640
        %v986 = vunpack.c.h.b16 %v640
        %v987 = vunpack.c.l.b16 %v641
        %v988 = vunpack.c.h.b16 %v641
        %v989 = vunpack.c.l.b16 %v642
        %v990 = vunpack.c.h.b16 %v642
        %v991 = vunpack.c.l.b16 %v643
        %v992 = vunpack.c.h.b16 %v643
        %v993 = vunpack.c.l.b16 %v644
        %v994 = vunpack.c.h.b16 %v644
        %v995 = vunpack.c.l.b16 %v645
        %v996 = vunpack.c.h.b16 %v645
        %v997 = vunpack.c.l.b16 %v646
        %v998 = vunpack.c.h.b16 %v646
        %v999 = vunpack.c.l.b16 %v647
        %v1000 = vunpack.c.h.b16 %v647
        %v1001 = vunpack.c.l.b16 %v648
        %v1002 = vunpack.c.h.b16 %v648
        %v1003 = vunpack.c.l.b16 %v649
        %v1004 = vunpack.c.h.b16 %v649
        %v1005 = vunpack.c.l.b16 %v650
        %v1006 = vunpack.c.h.b16 %v650
        %v1007 = vunpack.c.l.b16 %v651
        %v1008 = vunpack.c.h.b16 %v651
        %v1009 = vunpack.c.l.b16 %v652
        %v1010 = vunpack.c.h.b16 %v652
        %v1011 = vunpack.c.l.b16 %v653
        %v1012 = vunpack.c.h.b16 %v653
        %v1013 = vunpack.c.l.b16 %v654
        %v1014 = vunpack.c.h.b16 %v654
        %v1015 = vunpack.c.l.b16 %v655
        %v1016 = vunpack.c.h.b16 %v655
        %v1017 = vunpack.c.l.b16 %v656
        %v1018 = vunpack.c.h.b16 %v656
        %v1019 = vunpack.c.l.b16 %v657
        %v1020 = vunpack.c.h.b16 %v657
        %v1021 = vunpack.c.l.b16 %v658
        %v1022 = vunpack.c.h.b16 %v658
        %v1023 = vunpack.c.l.b16 %v659
        %v1024 = vunpack.c.h.b16 %v659
        %v1025 = vunpack.c.l.b16 %v660
        %v1026 = vunpack.c.h.b16 %v660
        %v1027 = vunpack.c.l.b16 %v661
        %v1028 = vunpack.c.h.b16 %v661
        %v1029 = vunpack.c.l.b16 %v662
        %v1030 = vunpack.c.h.b16 %v662
        %v1031 = vunpack.c.l.b16 %v663
        %v1032 = vunpack.c.h.b16 %v663
        %v1033 = vunpack.c.l.b16 %v664
        %v1034 = vunpack.c.h.b16 %v664
        %v1035 = vunpack.c.l.b16 %v665
        %v1036 = vunpack.c.h.b16 %v665
        %v1037 = vunpack.c.l.b16 %v666
        %v1038 = vunpack.c.h.b16 %v666
        %v1039 = vunpack.c.l.b16 %v667
        %v1040 = vunpack.c.h.b16 %v667
        %v1041 = vunpack.c.l.b16 %v668
        %v1042 = vunpack.c.h.b16 %v668
        %v1043 = vunpack.c.l.b16 %v669
        %v1044 = vunpack.c.h.b16 %v669
        %v1045 = vunpack.c.l.b16 %v670
        %v1046 = vunpack.c.h.b16 %v670
        %v1047 = vunpack.c.l.b16 %v671
        %v1048 = vunpack.c.h.b16 %v671
        %v1049 = vunpack.c.l.b16 %v672
        %v1050 = vunpack.c.h.b16 %v672
        %v1051 = vunpack.c.l.b16 %v673
        %v1052 = vunpack.c.h.b16 %v673
        %v1053 = vunpack.c.l.b16 %v674
        %v1054 = vunpack.c.h.b16 %v674
        %v1055 = vunpack.c.l.b16 %v675
        %v1056 = vunpack.c.h.b16 %v675
        %v1057 = vunpack.c.l.b16 %v676
        %v1058 = vunpack.c.h.b16 %v676
        %v1059 = vunpack.c.l.b16 %v677
        %v1060 = vunpack.c.h.b16 %v677
        %v1061 = vunpack.c.l.b16 %v678
        %v1062 = vunpack.c.h.b16 %v678
        %v1063 = vunpack.c.l.b16 %v679
        %v1064 = vunpack.c.h.b16 %v679
        %v1065 = vpack.c.b16 %v873, %v809
        %v1066 = vpack.c.b16 %v874, %v810
        %v1067 = vpack.c.b16 %v875, %v811
        %v1068 = vpack.c.b16 %v876, %v812
        %v1069 = vpack.c.b16 %v877, %v813
        %v1070 = vpack.c.b16 %v878, %v814
        %v1071 = vpack.c.b16 %v879, %v815
        %v1072 = vpack.c.b16 %v880, %v816
        %v1073 = vpack.c.b16 %v881, %v817
        %v1074 = vpack.c.b16 %v882, %v818
        %v1075 = vpack.c.b16 %v883, %v819
        %v1076 = vpack.c.b16 %v884, %v820
        %v1077 = vpack.c.b16 %v885, %v821
        %v1078 = vpack.c.b16 %v886, %v822
        %v1079 = vpack.c.b16 %v887, %v823
        %v1080 = vpack.c.b16 %v888, %v824
        %v1081 = vpack.c.b16 %v889, %v825
        %v1082 = vpack.c.b16 %v890, %v826
        %v1083 = vpack.c.b16 %v891, %v827
        %v1084 = vpack.c.b16 %v892, %v828
        %v1085 = vpack.c.b16 %v893, %v829
        %v1086 = vpack.c.b16 %v894, %v830
        %v1087 = vpack.c.b16 %v895, %v831
        %v1088 = vpack.c.b16 %v896, %v832
        %v1089 = vpack.c.b16 %v897, %v833
        %v1090 = vpack.c.b16 %v898, %v834
        %v1091 = vpack.c.b16 %v899, %v835
        %v1092 = vpack.c.b16 %v900, %v836
        %v1093 = vpack.c.b16 %v901, %v837
        %v1094 = vpack.c.b16 %v902, %v838
        %v1095 = vpack.c.b16 %v903, %v839
        %v1096 = vpack.c.b16 %v904, %v840
        %v1097 = vpack.c.b16 %v905, %v841
        %v1098 = vpack.c.b16 %v906, %v842
        %v1099 = vpack.c.b16 %v907, %v843
        %v1100 = vpack.c.b16 %v908, %v844
        %v1101 = vpack.c.b16 %v909, %v845
        %v1102 = vpack.c.b16 %v910, %v846
        %v1103 = vpack.c.b16 %v911, %v847
        %v1104 = vpack.c.b16 %v912, %v848
        %v1105 = vpack.c.b16 %v913, %v849
        %v1106 = vpack.c.b16 %v914, %v850
        %v1107 = vpack.c.b16 %v915, %v851
        %v1108 = vpack.c.b16 %v916, %v852
        %v1109 = vpack.c.b16 %v917, %v853
        %v1110 = vpack.c.b16 %v918, %v854
        %v1111 = vpack.c.b16 %v919, %v855
        %v1112 = vpack.c.b16 %v920, %v856
        %v1113 = vpack.c.b16 %v921, %v857
        %v1114 = vpack.c.b16 %v922, %v858
        %v1115 = vpack.c.b16 %v923, %v859
        %v1116 = vpack.c.b16 %v924, %v860
        %v1117 = vpack.c.b16 %v925, %v861
        %v1118 = vpack.c.b16 %v926, %v862
        %v1119 = vpack.c.b16 %v927, %v863
        %v1120 = vpack.c.b16 %v928, %v864
        %v1121 = vpack.c.b16 %v929, %v865
        %v1122 = vpack.c.b16 %v930, %v866
        %v1123 = vpack.c.b16 %v931, %v867
        %v1124 = vpack.c.b16 %v932, %v868
        %v1125 = vpack.c.b16 %v933, %v869
        %v1126 = vpack.c.b16 %v934, %v870
        %v1127 = vpack.c.b16 %v935, %v871
        %v1128 = vpack.c.b16 %v936, %v872
        %v1129 = vpack.c.b16 %v1001, %v937
        %v1130 = vpack.c.b16 %v1002, %v938
        %v1131 = vpack.c.b16 %v1003, %v939
        %v1132 = vpack.c.b16 %v1004, %v940
        %v1133 = vpack.c.b16 %v1005, %v941
        %v1134 = vpack.c.b16 %v1006, %v942
        %v1135 = vpack.c.b16 %v1007, %v943
        %v1136 = vpack.c.b16 %v1008, %v944
        %v1137 = vpack.c.b16 %v1009, %v945
        %v1138 = vpack.c.b16 %v1010, %v946
        %v1139 = vpack.c.b16 %v1011, %v947
        %v1140 = vpack.c.b16 %v1012, %v948
        %v1141 = vpack.c.b16 %v1013, %v949
        %v1142 = vpack.c.b16 %v1014, %v950
        %v1143 = vpack.c.b16 %v1015, %v951
        %v1144 = vpack.c.b16 %v1016, %v952
        %v1145 = vpack.c.b16 %v1017, %v953
        %v1146 = vpack.c.b16 %v1018, %v954
        %v1147 = vpack.c.b16 %v1019, %v955
        %v1148 = vpack.c.b16 %v1020, %v956
        %v1149 = vpack.c.b16 %v1021, %v957
        %v1150 = vpack.c.b16 %v1022, %v958
        %v1151 = vpack.c.b16 %v1023, %v959
        %v1152 = vpack.c.b16 %v1024, %v960
        %v1153 = vpack.c.b16 %v1025, %v961
        %v1154 = vpack.c.b16 %v1026, %v962
        %v1155 = vpack.c.b16 %v1027, %v963
        %v1156 = vpack.c.b16 %v1028, %v964
        %v1157 = vpack.c.b16 %v1029, %v965
        %v1158 = vpack.c.b16 %v1030, %v966
        %v1159 = vpack.c.b16 %v1031, %v967
        %v1160 = vpack.c.b16 %v1032, %v968
        %v1161 = vpack.c.b16 %v1033, %v969
        %v1162 = vpack.c.b16 %v1034, %v970
        %v1163 = vpack.c.b16 %v1035, %v971
        %v1164 = vpack.c.b16 %v1036, %v972
        %v1165 = vpack.c.b16 %v1037, %v973
        %v1166 = vpack.c.b16 %v1038, %v974
        %v1167 = vpack.c.b16 %v1039, %v975
        %v1168 = vpack.c.b16 %v1040, %v976
        %v1169 = vpack.c.b16 %v1041, %v977
        %v1170 = vpack.c.b16 %v1042, %v978
        %v1171 = vpack.c.b16 %v1043, %v979
        %v1172 = vpack.c.b16 %v1044, %v980
        %v1173 = vpack.c.b16 %v1045, %v981
        %v1174 = vpack.c.b16 %v1046, %v982
        %v1175 = vpack.c.b16 %v1047, %v983
        %v1176 = vpack.c.b16 %v1048, %v984
        %v1177 = vpack.c.b16 %v1049, %v985
        %v1178 = vpack.c.b16 %v1050, %v986
        %v1179 = vpack.c.b16 %v1051, %v987
        %v1180 = vpack.c.b16 %v1052, %v988
        %v1181 = vpack.c.b16 %v1053, %v989
        %v1182 = vpack.c.b16 %v1054, %v990
        %v1183 = vpack.c.b16 %v1055, %v991
        %v1184 = vpack.c.b16 %v1056, %v992
        %v1185 = vpack.c.b16 %v1057, %v993
        %v1186 = vpack.c.b16 %v1058, %v994
        %v1187 = vpack.c.b16 %v1059, %v995
        %v1188 = vpack.c.b16 %v1060, %v996
        %v1189 = vpack.c.b16 %v1061, %v997
        %v1190 = vpack.c.b16 %v1062, %v998
        %v1191 = vpack.c.b16 %v1063, %v999
        %v1192 = vpack.c.b16 %v1064, %v1000
        %1321 = vmatpush.bf16.xpose.msra.mxu0 0
        %1322 = vmatpush.bf16.xpose.msra.mxu0 0
        %1323 = vmatpush.bf16.xpose.msra.mxu0 0
        %1324 = vmatpush.bf16.xpose.msra.mxu0 0
        %1325 = vmatpush.bf16.xpose.msra.mxu0 0
        %1326 = vmatpush.bf16.xpose.msra.mxu0 0
        %1327 = vmatpush.bf16.xpose.msra.mxu0 %v1129
        %1328 = vmatpush.bf16.xpose.msra.mxu0 %v1065
        %1329 = vmatmul.bf16.gmra.mxu0 %v488
        %v1330 = vpop.f32.mrf.mxu0
        %v1331 = vadd.f32 0.0, %v1330
        %v1332 = vpop.f32.mrf.mxu0
        %1333 = vdwg.mxu0
        %1334 = vmatpush.bf16.xpose.msra.mxu0 0
        %1335 = vmatpush.bf16.xpose.msra.mxu0 0
        %1336 = vmatpush.bf16.xpose.msra.mxu0 0
        %1337 = vmatpush.bf16.xpose.msra.mxu0 0
        %1338 = vmatpush.bf16.xpose.msra.mxu0 0
        %1339 = vmatpush.bf16.xpose.msra.mxu0 0
        %1340 = vmatpush.bf16.xpose.msra.mxu0 %v1130
        %1341 = vmatpush.bf16.xpose.msra.mxu0 %v1066
        %1342 = vmatmul.bf16.gmra.mxu0 %v489
        %v1343 = vpop.f32.mrf.mxu0
        %v1344 = vadd.f32 %v1331, %v1343
        %v1345 = vpop.f32.mrf.mxu0
        %1346 = vdwg.mxu0
        %1347 = vmatpush.bf16.xpose.msra.mxu0 0
        %1348 = vmatpush.bf16.xpose.msra.mxu0 0
        %1349 = vmatpush.bf16.xpose.msra.mxu0 0
        %1350 = vmatpush.bf16.xpose.msra.mxu0 0
        %1351 = vmatpush.bf16.xpose.msra.mxu0 0
        %1352 = vmatpush.bf16.xpose.msra.mxu0 0
        %1353 = vmatpush.bf16.xpose.msra.mxu0 %v1131
        %1354 = vmatpush.bf16.xpose.msra.mxu0 %v1067
        %1355 = vmatmul.bf16.gmra.mxu0 %v490
        %v1356 = vpop.f32.mrf.mxu0
        %v1357 = vadd.f32 %v1344, %v1356
        %v1358 = vpop.f32.mrf.mxu0
        %1359 = vdwg.mxu0
        %1360 = vmatpush.bf16.xpose.msra.mxu0 0
        %1361 = vmatpush.bf16.xpose.msra.mxu0 0
        %1362 = vmatpush.bf16.xpose.msra.mxu0 0
        %1363 = vmatpush.bf16.xpose.msra.mxu0 0
        %1364 = vmatpush.bf16.xpose.msra.mxu0 0
        %1365 = vmatpush.bf16.xpose.msra.mxu0 0
        %1366 = vmatpush.bf16.xpose.msra.mxu0 %v1132
        %1367 = vmatpush.bf16.xpose.msra.mxu0 %v1068
        %1368 = vmatmul.bf16.gmra.mxu0 %v491
        %v1369 = vpop.f32.mrf.mxu0
        %v1370 = vadd.f32 %v1357, %v1369
        %v1371 = vpop.f32.mrf.mxu0
        %1372 = vdwg.mxu0
        %1373 = vmatpush.bf16.xpose.msra.mxu0 0
        %1374 = vmatpush.bf16.xpose.msra.mxu0 0
        %1375 = vmatpush.bf16.xpose.msra.mxu0 0
        %1376 = vmatpush.bf16.xpose.msra.mxu0 0
        %1377 = vmatpush.bf16.xpose.msra.mxu0 0
        %1378 = vmatpush.bf16.xpose.msra.mxu0 0
        %1379 = vmatpush.bf16.xpose.msra.mxu0 %v1133
        %1380 = vmatpush.bf16.xpose.msra.mxu0 %v1069
        %1381 = vmatmul.bf16.gmra.mxu0 %v492
        %v1382 = vpop.f32.mrf.mxu0
        %v1383 = vadd.f32 %v1370, %v1382
        %v1384 = vpop.f32.mrf.mxu0
        %1385 = vdwg.mxu0
        %1386 = vmatpush.bf16.xpose.msra.mxu0 0
        %1387 = vmatpush.bf16.xpose.msra.mxu0 0
        %1388 = vmatpush.bf16.xpose.msra.mxu0 0
        %1389 = vmatpush.bf16.xpose.msra.mxu0 0
        %1390 = vmatpush.bf16.xpose.msra.mxu0 0
        %1391 = vmatpush.bf16.xpose.msra.mxu0 0
        %1392 = vmatpush.bf16.xpose.msra.mxu0 %v1134
        %1393 = vmatpush.bf16.xpose.msra.mxu0 %v1070
        %1394 = vmatmul.bf16.gmra.mxu0 %v493
        %v1395 = vpop.f32.mrf.mxu0
        %v1396 = vadd.f32 %v1383, %v1395
        %v1397 = vpop.f32.mrf.mxu0
        %1398 = vdwg.mxu0
        %1399 = vmatpush.bf16.xpose.msra.mxu0 0
        %1400 = vmatpush.bf16.xpose.msra.mxu0 0
        %1401 = vmatpush.bf16.xpose.msra.mxu0 0
        %1402 = vmatpush.bf16.xpose.msra.mxu0 0
        %1403 = vmatpush.bf16.xpose.msra.mxu0 0
        %1404 = vmatpush.bf16.xpose.msra.mxu0 0
        %1405 = vmatpush.bf16.xpose.msra.mxu0 %v1135
        %1406 = vmatpush.bf16.xpose.msra.mxu0 %v1071
        %1407 = vmatmul.bf16.gmra.mxu0 %v494
        %v1408 = vpop.f32.mrf.mxu0
        %v1409 = vadd.f32 %v1396, %v1408
        %v1410 = vpop.f32.mrf.mxu0
        %1411 = vdwg.mxu0
        %1412 = vmatpush.bf16.xpose.msra.mxu0 0
        %1413 = vmatpush.bf16.xpose.msra.mxu0 0
        %1414 = vmatpush.bf16.xpose.msra.mxu0 0
        %1415 = vmatpush.bf16.xpose.msra.mxu0 0
        %1416 = vmatpush.bf16.xpose.msra.mxu0 0
        %1417 = vmatpush.bf16.xpose.msra.mxu0 0
        %1418 = vmatpush.bf16.xpose.msra.mxu0 %v1136
        %1419 = vmatpush.bf16.xpose.msra.mxu0 %v1072
        %1420 = vmatmul.bf16.gmra.mxu0 %v495
        %v1421 = vpop.f32.mrf.mxu0
        %v1422 = vadd.f32 %v1409, %v1421
        %v1423 = vpop.f32.mrf.mxu0
        %1424 = vdwg.mxu0
        %1425 = vmatpush.bf16.xpose.msra.mxu0 0
        %1426 = vmatpush.bf16.xpose.msra.mxu0 0
        %1427 = vmatpush.bf16.xpose.msra.mxu0 0
        %1428 = vmatpush.bf16.xpose.msra.mxu0 0
        %1429 = vmatpush.bf16.xpose.msra.mxu0 0
        %1430 = vmatpush.bf16.xpose.msra.mxu0 0
        %1431 = vmatpush.bf16.xpose.msra.mxu0 %v1137
        %1432 = vmatpush.bf16.xpose.msra.mxu0 %v1073
        %1433 = vmatmul.bf16.gmra.mxu0 %v496
        %v1434 = vpop.f32.mrf.mxu0
        %v1435 = vadd.f32 %v1422, %v1434
        %v1436 = vpop.f32.mrf.mxu0
        %1437 = vdwg.mxu0
        %1438 = vmatpush.bf16.xpose.msra.mxu0 0
        %1439 = vmatpush.bf16.xpose.msra.mxu0 0
        %1440 = vmatpush.bf16.xpose.msra.mxu0 0
        %1441 = vmatpush.bf16.xpose.msra.mxu0 0
        %1442 = vmatpush.bf16.xpose.msra.mxu0 0
        %1443 = vmatpush.bf16.xpose.msra.mxu0 0
        %1444 = vmatpush.bf16.xpose.msra.mxu0 %v1138
        %1445 = vmatpush.bf16.xpose.msra.mxu0 %v1074
        %1446 = vmatmul.bf16.gmra.mxu0 %v497
        %v1447 = vpop.f32.mrf.mxu0
        %v1448 = vadd.f32 %v1435, %v1447
        %v1449 = vpop.f32.mrf.mxu0
        %1450 = vdwg.mxu0
        %1451 = vmatpush.bf16.xpose.msra.mxu0 0
        %1452 = vmatpush.bf16.xpose.msra.mxu0 0
        %1453 = vmatpush.bf16.xpose.msra.mxu0 0
        %1454 = vmatpush.bf16.xpose.msra.mxu0 0
        %1455 = vmatpush.bf16.xpose.msra.mxu0 0
        %1456 = vmatpush.bf16.xpose.msra.mxu0 0
        %1457 = vmatpush.bf16.xpose.msra.mxu0 %v1139
        %1458 = vmatpush.bf16.xpose.msra.mxu0 %v1075
        %1459 = vmatmul.bf16.gmra.mxu0 %v498
        %v1460 = vpop.f32.mrf.mxu0
        %v1461 = vadd.f32 %v1448, %v1460
        %v1462 = vpop.f32.mrf.mxu0
        %1463 = vdwg.mxu0
        %1464 = vmatpush.bf16.xpose.msra.mxu0 0
        %1465 = vmatpush.bf16.xpose.msra.mxu0 0
        %1466 = vmatpush.bf16.xpose.msra.mxu0 0
        %1467 = vmatpush.bf16.xpose.msra.mxu0 0
        %1468 = vmatpush.bf16.xpose.msra.mxu0 0
        %1469 = vmatpush.bf16.xpose.msra.mxu0 0
        %1470 = vmatpush.bf16.xpose.msra.mxu0 %v1140
        %1471 = vmatpush.bf16.xpose.msra.mxu0 %v1076
        %1472 = vmatmul.bf16.gmra.mxu0 %v499
        %v1473 = vpop.f32.mrf.mxu0
        %v1474 = vadd.f32 %v1461, %v1473
        %v1475 = vpop.f32.mrf.mxu0
        %1476 = vdwg.mxu0
        %1477 = vmatpush.bf16.xpose.msra.mxu0 0
        %1478 = vmatpush.bf16.xpose.msra.mxu0 0
        %1479 = vmatpush.bf16.xpose.msra.mxu0 0
        %1480 = vmatpush.bf16.xpose.msra.mxu0 0
        %1481 = vmatpush.bf16.xpose.msra.mxu0 0
        %1482 = vmatpush.bf16.xpose.msra.mxu0 0
        %1483 = vmatpush.bf16.xpose.msra.mxu0 %v1141
        %1484 = vmatpush.bf16.xpose.msra.mxu0 %v1077
        %1485 = vmatmul.bf16.gmra.mxu0 %v500
        %v1486 = vpop.f32.mrf.mxu0
        %v1487 = vadd.f32 %v1474, %v1486
        %v1488 = vpop.f32.mrf.mxu0
        %1489 = vdwg.mxu0
        %1490 = vmatpush.bf16.xpose.msra.mxu0 0
        %1491 = vmatpush.bf16.xpose.msra.mxu0 0
        %1492 = vmatpush.bf16.xpose.msra.mxu0 0
        %1493 = vmatpush.bf16.xpose.msra.mxu0 0
        %1494 = vmatpush.bf16.xpose.msra.mxu0 0
        %1495 = vmatpush.bf16.xpose.msra.mxu0 0
        %1496 = vmatpush.bf16.xpose.msra.mxu0 %v1142
        %1497 = vmatpush.bf16.xpose.msra.mxu0 %v1078
        %1498 = vmatmul.bf16.gmra.mxu0 %v501
        %v1499 = vpop.f32.mrf.mxu0
        %v1500 = vadd.f32 %v1487, %v1499
        %v1501 = vpop.f32.mrf.mxu0
        %1502 = vdwg.mxu0
        %1503 = vmatpush.bf16.xpose.msra.mxu0 0
        %1504 = vmatpush.bf16.xpose.msra.mxu0 0
        %1505 = vmatpush.bf16.xpose.msra.mxu0 0
        %1506 = vmatpush.bf16.xpose.msra.mxu0 0
        %1507 = vmatpush.bf16.xpose.msra.mxu0 0
        %1508 = vmatpush.bf16.xpose.msra.mxu0 0
        %1509 = vmatpush.bf16.xpose.msra.mxu0 %v1143
        %1510 = vmatpush.bf16.xpose.msra.mxu0 %v1079
        %1511 = vmatmul.bf16.gmra.mxu0 %v502
        %v1512 = vpop.f32.mrf.mxu0
        %v1513 = vadd.f32 %v1500, %v1512
        %v1514 = vpop.f32.mrf.mxu0
        %1515 = vdwg.mxu0
        %1516 = vmatpush.bf16.xpose.msra.mxu0 0
        %1517 = vmatpush.bf16.xpose.msra.mxu0 0
        %1518 = vmatpush.bf16.xpose.msra.mxu0 0
        %1519 = vmatpush.bf16.xpose.msra.mxu0 0
        %1520 = vmatpush.bf16.xpose.msra.mxu0 0
        %1521 = vmatpush.bf16.xpose.msra.mxu0 0
        %1522 = vmatpush.bf16.xpose.msra.mxu0 %v1144
        %1523 = vmatpush.bf16.xpose.msra.mxu0 %v1080
        %1524 = vmatmul.bf16.gmra.mxu0 %v503
        %v1525 = vpop.f32.mrf.mxu0
        %v1526 = vadd.f32 %v1513, %v1525
        %v1527 = vpop.f32.mrf.mxu0
        %1528 = vdwg.mxu0
        %1529 = vmatpush.bf16.xpose.msra.mxu0 0
        %1530 = vmatpush.bf16.xpose.msra.mxu0 0
        %1531 = vmatpush.bf16.xpose.msra.mxu0 0
        %1532 = vmatpush.bf16.xpose.msra.mxu0 0
        %1533 = vmatpush.bf16.xpose.msra.mxu0 0
        %1534 = vmatpush.bf16.xpose.msra.mxu0 0
        %1535 = vmatpush.bf16.xpose.msra.mxu0 %v1145
        %1536 = vmatpush.bf16.xpose.msra.mxu0 %v1081
        %1537 = vmatmul.bf16.gmra.mxu0 %v504
        %v1538 = vpop.f32.mrf.mxu0
        %v1539 = vadd.f32 %v1526, %v1538
        %v1540 = vpop.f32.mrf.mxu0
        %1541 = vdwg.mxu0
        %1542 = vmatpush.bf16.xpose.msra.mxu0 0
        %1543 = vmatpush.bf16.xpose.msra.mxu0 0
        %1544 = vmatpush.bf16.xpose.msra.mxu0 0
        %1545 = vmatpush.bf16.xpose.msra.mxu0 0
        %1546 = vmatpush.bf16.xpose.msra.mxu0 0
        %1547 = vmatpush.bf16.xpose.msra.mxu0 0
        %1548 = vmatpush.bf16.xpose.msra.mxu0 %v1146
        %1549 = vmatpush.bf16.xpose.msra.mxu0 %v1082
        %1550 = vmatmul.bf16.gmra.mxu0 %v505
        %v1551 = vpop.f32.mrf.mxu0
        %v1552 = vadd.f32 %v1539, %v1551
        %v1553 = vpop.f32.mrf.mxu0
        %1554 = vdwg.mxu0
        %1555 = vmatpush.bf16.xpose.msra.mxu0 0
        %1556 = vmatpush.bf16.xpose.msra.mxu0 0
        %1557 = vmatpush.bf16.xpose.msra.mxu0 0
        %1558 = vmatpush.bf16.xpose.msra.mxu0 0
        %1559 = vmatpush.bf16.xpose.msra.mxu0 0
        %1560 = vmatpush.bf16.xpose.msra.mxu0 0
        %1561 = vmatpush.bf16.xpose.msra.mxu0 %v1147
        %1562 = vmatpush.bf16.xpose.msra.mxu0 %v1083
        %1563 = vmatmul.bf16.gmra.mxu0 %v506
        %v1564 = vpop.f32.mrf.mxu0
        %v1565 = vadd.f32 %v1552, %v1564
        %v1566 = vpop.f32.mrf.mxu0
        %1567 = vdwg.mxu0
        %1568 = vmatpush.bf16.xpose.msra.mxu0 0
        %1569 = vmatpush.bf16.xpose.msra.mxu0 0
        %1570 = vmatpush.bf16.xpose.msra.mxu0 0
        %1571 = vmatpush.bf16.xpose.msra.mxu0 0
        %1572 = vmatpush.bf16.xpose.msra.mxu0 0
        %1573 = vmatpush.bf16.xpose.msra.mxu0 0
        %1574 = vmatpush.bf16.xpose.msra.mxu0 %v1148
        %1575 = vmatpush.bf16.xpose.msra.mxu0 %v1084
        %1576 = vmatmul.bf16.gmra.mxu0 %v507
        %v1577 = vpop.f32.mrf.mxu0
        %v1578 = vadd.f32 %v1565, %v1577
        %v1579 = vpop.f32.mrf.mxu0
        %1580 = vdwg.mxu0
        %1581 = vmatpush.bf16.xpose.msra.mxu0 0
        %1582 = vmatpush.bf16.xpose.msra.mxu0 0
        %1583 = vmatpush.bf16.xpose.msra.mxu0 0
        %1584 = vmatpush.bf16.xpose.msra.mxu0 0
        %1585 = vmatpush.bf16.xpose.msra.mxu0 0
        %1586 = vmatpush.bf16.xpose.msra.mxu0 0
        %1587 = vmatpush.bf16.xpose.msra.mxu0 %v1149
        %1588 = vmatpush.bf16.xpose.msra.mxu0 %v1085
        %1589 = vmatmul.bf16.gmra.mxu0 %v508
        %v1590 = vpop.f32.mrf.mxu0
        %v1591 = vadd.f32 %v1578, %v1590
        %v1592 = vpop.f32.mrf.mxu0
        %1593 = vdwg.mxu0
        %1594 = vmatpush.bf16.xpose.msra.mxu0 0
        %1595 = vmatpush.bf16.xpose.msra.mxu0 0
        %1596 = vmatpush.bf16.xpose.msra.mxu0 0
        %1597 = vmatpush.bf16.xpose.msra.mxu0 0
        %1598 = vmatpush.bf16.xpose.msra.mxu0 0
        %1599 = vmatpush.bf16.xpose.msra.mxu0 0
        %1600 = vmatpush.bf16.xpose.msra.mxu0 %v1150
        %1601 = vmatpush.bf16.xpose.msra.mxu0 %v1086
        %1602 = vmatmul.bf16.gmra.mxu0 %v509
        %v1603 = vpop.f32.mrf.mxu0
        %v1604 = vadd.f32 %v1591, %v1603
        %v1605 = vpop.f32.mrf.mxu0
        %1606 = vdwg.mxu0
        %1607 = vmatpush.bf16.xpose.msra.mxu0 0
        %1608 = vmatpush.bf16.xpose.msra.mxu0 0
        %1609 = vmatpush.bf16.xpose.msra.mxu0 0
        %1610 = vmatpush.bf16.xpose.msra.mxu0 0
        %1611 = vmatpush.bf16.xpose.msra.mxu0 0
        %1612 = vmatpush.bf16.xpose.msra.mxu0 0
        %1613 = vmatpush.bf16.xpose.msra.mxu0 %v1151
        %1614 = vmatpush.bf16.xpose.msra.mxu0 %v1087
        %1615 = vmatmul.bf16.gmra.mxu0 %v510
        %v1616 = vpop.f32.mrf.mxu0
        %v1617 = vadd.f32 %v1604, %v1616
        %v1618 = vpop.f32.mrf.mxu0
        %1619 = vdwg.mxu0
        %1620 = vmatpush.bf16.xpose.msra.mxu0 0
        %1621 = vmatpush.bf16.xpose.msra.mxu0 0
        %1622 = vmatpush.bf16.xpose.msra.mxu0 0
        %1623 = vmatpush.bf16.xpose.msra.mxu0 0
        %1624 = vmatpush.bf16.xpose.msra.mxu0 0
        %1625 = vmatpush.bf16.xpose.msra.mxu0 0
        %1626 = vmatpush.bf16.xpose.msra.mxu0 %v1152
        %1627 = vmatpush.bf16.xpose.msra.mxu0 %v1088
        %1628 = vmatmul.bf16.gmra.mxu0 %v511
        %v1629 = vpop.f32.mrf.mxu0
        %v1630 = vadd.f32 %v1617, %v1629
        %v1631 = vpop.f32.mrf.mxu0
        %1632 = vdwg.mxu0
        %1633 = vmatpush.bf16.xpose.msra.mxu0 0
        %1634 = vmatpush.bf16.xpose.msra.mxu0 0
        %1635 = vmatpush.bf16.xpose.msra.mxu0 0
        %1636 = vmatpush.bf16.xpose.msra.mxu0 0
        %1637 = vmatpush.bf16.xpose.msra.mxu0 0
        %1638 = vmatpush.bf16.xpose.msra.mxu0 0
        %1639 = vmatpush.bf16.xpose.msra.mxu0 %v1153
        %1640 = vmatpush.bf16.xpose.msra.mxu0 %v1089
        %1641 = vmatmul.bf16.gmra.mxu0 %v512
        %v1642 = vpop.f32.mrf.mxu0
        %v1643 = vadd.f32 %v1630, %v1642
        %v1644 = vpop.f32.mrf.mxu0
        %1645 = vdwg.mxu0
        %1646 = vmatpush.bf16.xpose.msra.mxu0 0
        %1647 = vmatpush.bf16.xpose.msra.mxu0 0
        %1648 = vmatpush.bf16.xpose.msra.mxu0 0
        %1649 = vmatpush.bf16.xpose.msra.mxu0 0
        %1650 = vmatpush.bf16.xpose.msra.mxu0 0
        %1651 = vmatpush.bf16.xpose.msra.mxu0 0
        %1652 = vmatpush.bf16.xpose.msra.mxu0 %v1154
        %1653 = vmatpush.bf16.xpose.msra.mxu0 %v1090
        %1654 = vmatmul.bf16.gmra.mxu0 %v513
        %v1655 = vpop.f32.mrf.mxu0
        %v1656 = vadd.f32 %v1643, %v1655
        %v1657 = vpop.f32.mrf.mxu0
        %1658 = vdwg.mxu0
        %1659 = vmatpush.bf16.xpose.msra.mxu0 0
        %1660 = vmatpush.bf16.xpose.msra.mxu0 0
        %1661 = vmatpush.bf16.xpose.msra.mxu0 0
        %1662 = vmatpush.bf16.xpose.msra.mxu0 0
        %1663 = vmatpush.bf16.xpose.msra.mxu0 0
        %1664 = vmatpush.bf16.xpose.msra.mxu0 0
        %1665 = vmatpush.bf16.xpose.msra.mxu0 %v1155
        %1666 = vmatpush.bf16.xpose.msra.mxu0 %v1091
        %1667 = vmatmul.bf16.gmra.mxu0 %v514
        %v1668 = vpop.f32.mrf.mxu0
        %v1669 = vadd.f32 %v1656, %v1668
        %v1670 = vpop.f32.mrf.mxu0
        %1671 = vdwg.mxu0
        %1672 = vmatpush.bf16.xpose.msra.mxu0 0
        %1673 = vmatpush.bf16.xpose.msra.mxu0 0
        %1674 = vmatpush.bf16.xpose.msra.mxu0 0
        %1675 = vmatpush.bf16.xpose.msra.mxu0 0
        %1676 = vmatpush.bf16.xpose.msra.mxu0 0
        %1677 = vmatpush.bf16.xpose.msra.mxu0 0
        %1678 = vmatpush.bf16.xpose.msra.mxu0 %v1156
        %1679 = vmatpush.bf16.xpose.msra.mxu0 %v1092
        %1680 = vmatmul.bf16.gmra.mxu0 %v515
        %v1681 = vpop.f32.mrf.mxu0
        %v1682 = vadd.f32 %v1669, %v1681
        %v1683 = vpop.f32.mrf.mxu0
        %1684 = vdwg.mxu0
        %1685 = vmatpush.bf16.xpose.msra.mxu0 0
        %1686 = vmatpush.bf16.xpose.msra.mxu0 0
        %1687 = vmatpush.bf16.xpose.msra.mxu0 0
        %1688 = vmatpush.bf16.xpose.msra.mxu0 0
        %1689 = vmatpush.bf16.xpose.msra.mxu0 0
        %1690 = vmatpush.bf16.xpose.msra.mxu0 0
        %1691 = vmatpush.bf16.xpose.msra.mxu0 %v1157
        %1692 = vmatpush.bf16.xpose.msra.mxu0 %v1093
        %1693 = vmatmul.bf16.gmra.mxu0 %v516
        %v1694 = vpop.f32.mrf.mxu0
        %v1695 = vadd.f32 %v1682, %v1694
        %v1696 = vpop.f32.mrf.mxu0
        %1697 = vdwg.mxu0
        %1698 = vmatpush.bf16.xpose.msra.mxu0 0
        %1699 = vmatpush.bf16.xpose.msra.mxu0 0
        %1700 = vmatpush.bf16.xpose.msra.mxu0 0
        %1701 = vmatpush.bf16.xpose.msra.mxu0 0
        %1702 = vmatpush.bf16.xpose.msra.mxu0 0
        %1703 = vmatpush.bf16.xpose.msra.mxu0 0
        %1704 = vmatpush.bf16.xpose.msra.mxu0 %v1158
        %1705 = vmatpush.bf16.xpose.msra.mxu0 %v1094
        %1706 = vmatmul.bf16.gmra.mxu0 %v517
        %v1707 = vpop.f32.mrf.mxu0
        %v1708 = vadd.f32 %v1695, %v1707
        %v1709 = vpop.f32.mrf.mxu0
        %1710 = vdwg.mxu0
        %1711 = vmatpush.bf16.xpose.msra.mxu0 0
        %1712 = vmatpush.bf16.xpose.msra.mxu0 0
        %1713 = vmatpush.bf16.xpose.msra.mxu0 0
        %1714 = vmatpush.bf16.xpose.msra.mxu0 0
        %1715 = vmatpush.bf16.xpose.msra.mxu0 0
        %1716 = vmatpush.bf16.xpose.msra.mxu0 0
        %1717 = vmatpush.bf16.xpose.msra.mxu0 %v1159
        %1718 = vmatpush.bf16.xpose.msra.mxu0 %v1095
        %1719 = vmatmul.bf16.gmra.mxu0 %v518
        %v1720 = vpop.f32.mrf.mxu0
        %v1721 = vadd.f32 %v1708, %v1720
        %v1722 = vpop.f32.mrf.mxu0
        %1723 = vdwg.mxu0
        %1724 = vmatpush.bf16.xpose.msra.mxu0 0
        %1725 = vmatpush.bf16.xpose.msra.mxu0 0
        %1726 = vmatpush.bf16.xpose.msra.mxu0 0
        %1727 = vmatpush.bf16.xpose.msra.mxu0 0
        %1728 = vmatpush.bf16.xpose.msra.mxu0 0
        %1729 = vmatpush.bf16.xpose.msra.mxu0 0
        %1730 = vmatpush.bf16.xpose.msra.mxu0 %v1160
        %1731 = vmatpush.bf16.xpose.msra.mxu0 %v1096
        %1732 = vmatmul.bf16.gmra.mxu0 %v519
        %v1733 = vpop.f32.mrf.mxu0
        %v1734 = vadd.f32 %v1721, %v1733
        %v1735 = vpop.f32.mrf.mxu0
        %1736 = vdwg.mxu0
        %1737 = vmatpush.bf16.xpose.msra.mxu0 0
        %1738 = vmatpush.bf16.xpose.msra.mxu0 0
        %1739 = vmatpush.bf16.xpose.msra.mxu0 0
        %1740 = vmatpush.bf16.xpose.msra.mxu0 0
        %1741 = vmatpush.bf16.xpose.msra.mxu0 0
        %1742 = vmatpush.bf16.xpose.msra.mxu0 0
        %1743 = vmatpush.bf16.xpose.msra.mxu0 %v1161
        %1744 = vmatpush.bf16.xpose.msra.mxu0 %v1097
        %1745 = vmatmul.bf16.gmra.mxu0 %v520
        %v1746 = vpop.f32.mrf.mxu0
        %v1747 = vadd.f32 %v1734, %v1746
        %v1748 = vpop.f32.mrf.mxu0
        %1749 = vdwg.mxu0
        %1750 = vmatpush.bf16.xpose.msra.mxu0 0
        %1751 = vmatpush.bf16.xpose.msra.mxu0 0
        %1752 = vmatpush.bf16.xpose.msra.mxu0 0
        %1753 = vmatpush.bf16.xpose.msra.mxu0 0
        %1754 = vmatpush.bf16.xpose.msra.mxu0 0
        %1755 = vmatpush.bf16.xpose.msra.mxu0 0
        %1756 = vmatpush.bf16.xpose.msra.mxu0 %v1162
        %1757 = vmatpush.bf16.xpose.msra.mxu0 %v1098
        %1758 = vmatmul.bf16.gmra.mxu0 %v521
        %v1759 = vpop.f32.mrf.mxu0
        %v1760 = vadd.f32 %v1747, %v1759
        %v1761 = vpop.f32.mrf.mxu0
        %1762 = vdwg.mxu0
        %1763 = vmatpush.bf16.xpose.msra.mxu0 0
        %1764 = vmatpush.bf16.xpose.msra.mxu0 0
        %1765 = vmatpush.bf16.xpose.msra.mxu0 0
        %1766 = vmatpush.bf16.xpose.msra.mxu0 0
        %1767 = vmatpush.bf16.xpose.msra.mxu0 0
        %1768 = vmatpush.bf16.xpose.msra.mxu0 0
        %1769 = vmatpush.bf16.xpose.msra.mxu0 %v1163
        %1770 = vmatpush.bf16.xpose.msra.mxu0 %v1099
        %1771 = vmatmul.bf16.gmra.mxu0 %v522
        %v1772 = vpop.f32.mrf.mxu0
        %v1773 = vadd.f32 %v1760, %v1772
        %v1774 = vpop.f32.mrf.mxu0
        %1775 = vdwg.mxu0
        %1776 = vmatpush.bf16.xpose.msra.mxu0 0
        %1777 = vmatpush.bf16.xpose.msra.mxu0 0
        %1778 = vmatpush.bf16.xpose.msra.mxu0 0
        %1779 = vmatpush.bf16.xpose.msra.mxu0 0
        %1780 = vmatpush.bf16.xpose.msra.mxu0 0
        %1781 = vmatpush.bf16.xpose.msra.mxu0 0
        %1782 = vmatpush.bf16.xpose.msra.mxu0 %v1164
        %1783 = vmatpush.bf16.xpose.msra.mxu0 %v1100
        %1784 = vmatmul.bf16.gmra.mxu0 %v523
        %v1785 = vpop.f32.mrf.mxu0
        %v1786 = vadd.f32 %v1773, %v1785
        %v1787 = vpop.f32.mrf.mxu0
        %1788 = vdwg.mxu0
        %1789 = vmatpush.bf16.xpose.msra.mxu0 0
        %1790 = vmatpush.bf16.xpose.msra.mxu0 0
        %1791 = vmatpush.bf16.xpose.msra.mxu0 0
        %1792 = vmatpush.bf16.xpose.msra.mxu0 0
        %1793 = vmatpush.bf16.xpose.msra.mxu0 0
        %1794 = vmatpush.bf16.xpose.msra.mxu0 0
        %1795 = vmatpush.bf16.xpose.msra.mxu0 %v1165
        %1796 = vmatpush.bf16.xpose.msra.mxu0 %v1101
        %1797 = vmatmul.bf16.gmra.mxu0 %v524
        %v1798 = vpop.f32.mrf.mxu0
        %v1799 = vadd.f32 %v1786, %v1798
        %v1800 = vpop.f32.mrf.mxu0
        %1801 = vdwg.mxu0
        %1802 = vmatpush.bf16.xpose.msra.mxu0 0
        %1803 = vmatpush.bf16.xpose.msra.mxu0 0
        %1804 = vmatpush.bf16.xpose.msra.mxu0 0
        %1805 = vmatpush.bf16.xpose.msra.mxu0 0
        %1806 = vmatpush.bf16.xpose.msra.mxu0 0
        %1807 = vmatpush.bf16.xpose.msra.mxu0 0
        %1808 = vmatpush.bf16.xpose.msra.mxu0 %v1166
        %1809 = vmatpush.bf16.xpose.msra.mxu0 %v1102
        %1810 = vmatmul.bf16.gmra.mxu0 %v525
        %v1811 = vpop.f32.mrf.mxu0
        %v1812 = vadd.f32 %v1799, %v1811
        %v1813 = vpop.f32.mrf.mxu0
        %1814 = vdwg.mxu0
        %1815 = vmatpush.bf16.xpose.msra.mxu0 0
        %1816 = vmatpush.bf16.xpose.msra.mxu0 0
        %1817 = vmatpush.bf16.xpose.msra.mxu0 0
        %1818 = vmatpush.bf16.xpose.msra.mxu0 0
        %1819 = vmatpush.bf16.xpose.msra.mxu0 0
        %1820 = vmatpush.bf16.xpose.msra.mxu0 0
        %1821 = vmatpush.bf16.xpose.msra.mxu0 %v1167
        %1822 = vmatpush.bf16.xpose.msra.mxu0 %v1103
        %1823 = vmatmul.bf16.gmra.mxu0 %v526
        %v1824 = vpop.f32.mrf.mxu0
        %v1825 = vadd.f32 %v1812, %v1824
        %v1826 = vpop.f32.mrf.mxu0
        %1827 = vdwg.mxu0
        %1828 = vmatpush.bf16.xpose.msra.mxu0 0
        %1829 = vmatpush.bf16.xpose.msra.mxu0 0
        %1830 = vmatpush.bf16.xpose.msra.mxu0 0
        %1831 = vmatpush.bf16.xpose.msra.mxu0 0
        %1832 = vmatpush.bf16.xpose.msra.mxu0 0
        %1833 = vmatpush.bf16.xpose.msra.mxu0 0
        %1834 = vmatpush.bf16.xpose.msra.mxu0 %v1168
        %1835 = vmatpush.bf16.xpose.msra.mxu0 %v1104
        %1836 = vmatmul.bf16.gmra.mxu0 %v527
        %v1837 = vpop.f32.mrf.mxu0
        %v1838 = vadd.f32 %v1825, %v1837
        %v1839 = vpop.f32.mrf.mxu0
        %1840 = vdwg.mxu0
        %1841 = vmatpush.bf16.xpose.msra.mxu0 0
        %1842 = vmatpush.bf16.xpose.msra.mxu0 0
        %1843 = vmatpush.bf16.xpose.msra.mxu0 0
        %1844 = vmatpush.bf16.xpose.msra.mxu0 0
        %1845 = vmatpush.bf16.xpose.msra.mxu0 0
        %1846 = vmatpush.bf16.xpose.msra.mxu0 0
        %1847 = vmatpush.bf16.xpose.msra.mxu0 %v1169
        %1848 = vmatpush.bf16.xpose.msra.mxu0 %v1105
        %1849 = vmatmul.bf16.gmra.mxu0 %v528
        %v1850 = vpop.f32.mrf.mxu0
        %v1851 = vadd.f32 %v1838, %v1850
        %v1852 = vpop.f32.mrf.mxu0
        %1853 = vdwg.mxu0
        %1854 = vmatpush.bf16.xpose.msra.mxu0 0
        %1855 = vmatpush.bf16.xpose.msra.mxu0 0
        %1856 = vmatpush.bf16.xpose.msra.mxu0 0
        %1857 = vmatpush.bf16.xpose.msra.mxu0 0
        %1858 = vmatpush.bf16.xpose.msra.mxu0 0
        %1859 = vmatpush.bf16.xpose.msra.mxu0 0
        %1860 = vmatpush.bf16.xpose.msra.mxu0 %v1170
        %1861 = vmatpush.bf16.xpose.msra.mxu0 %v1106
        %1862 = vmatmul.bf16.gmra.mxu0 %v529
        %v1863 = vpop.f32.mrf.mxu0
        %v1864 = vadd.f32 %v1851, %v1863
        %v1865 = vpop.f32.mrf.mxu0
        %1866 = vdwg.mxu0
        %1867 = vmatpush.bf16.xpose.msra.mxu0 0
        %1868 = vmatpush.bf16.xpose.msra.mxu0 0
        %1869 = vmatpush.bf16.xpose.msra.mxu0 0
        %1870 = vmatpush.bf16.xpose.msra.mxu0 0
        %1871 = vmatpush.bf16.xpose.msra.mxu0 0
        %1872 = vmatpush.bf16.xpose.msra.mxu0 0
        %1873 = vmatpush.bf16.xpose.msra.mxu0 %v1171
        %1874 = vmatpush.bf16.xpose.msra.mxu0 %v1107
        %1875 = vmatmul.bf16.gmra.mxu0 %v530
        %v1876 = vpop.f32.mrf.mxu0
        %v1877 = vadd.f32 %v1864, %v1876
        %v1878 = vpop.f32.mrf.mxu0
        %1879 = vdwg.mxu0
        %1880 = vmatpush.bf16.xpose.msra.mxu0 0
        %1881 = vmatpush.bf16.xpose.msra.mxu0 0
        %1882 = vmatpush.bf16.xpose.msra.mxu0 0
        %1883 = vmatpush.bf16.xpose.msra.mxu0 0
        %1884 = vmatpush.bf16.xpose.msra.mxu0 0
        %1885 = vmatpush.bf16.xpose.msra.mxu0 0
        %1886 = vmatpush.bf16.xpose.msra.mxu0 %v1172
        %1887 = vmatpush.bf16.xpose.msra.mxu0 %v1108
        %1888 = vmatmul.bf16.gmra.mxu0 %v531
        %v1889 = vpop.f32.mrf.mxu0
        %v1890 = vadd.f32 %v1877, %v1889
        %v1891 = vpop.f32.mrf.mxu0
        %1892 = vdwg.mxu0
        %1893 = vmatpush.bf16.xpose.msra.mxu0 0
        %1894 = vmatpush.bf16.xpose.msra.mxu0 0
        %1895 = vmatpush.bf16.xpose.msra.mxu0 0
        %1896 = vmatpush.bf16.xpose.msra.mxu0 0
        %1897 = vmatpush.bf16.xpose.msra.mxu0 0
        %1898 = vmatpush.bf16.xpose.msra.mxu0 0
        %1899 = vmatpush.bf16.xpose.msra.mxu0 %v1173
        %1900 = vmatpush.bf16.xpose.msra.mxu0 %v1109
        %1901 = vmatmul.bf16.gmra.mxu0 %v532
        %v1902 = vpop.f32.mrf.mxu0
        %v1903 = vadd.f32 %v1890, %v1902
        %v1904 = vpop.f32.mrf.mxu0
        %1905 = vdwg.mxu0
        %1906 = vmatpush.bf16.xpose.msra.mxu0 0
        %1907 = vmatpush.bf16.xpose.msra.mxu0 0
        %1908 = vmatpush.bf16.xpose.msra.mxu0 0
        %1909 = vmatpush.bf16.xpose.msra.mxu0 0
        %1910 = vmatpush.bf16.xpose.msra.mxu0 0
        %1911 = vmatpush.bf16.xpose.msra.mxu0 0
        %1912 = vmatpush.bf16.xpose.msra.mxu0 %v1174
        %1913 = vmatpush.bf16.xpose.msra.mxu0 %v1110
        %1914 = vmatmul.bf16.gmra.mxu0 %v533
        %v1915 = vpop.f32.mrf.mxu0
        %v1916 = vadd.f32 %v1903, %v1915
        %v1917 = vpop.f32.mrf.mxu0
        %1918 = vdwg.mxu0
        %1919 = vmatpush.bf16.xpose.msra.mxu0 0
        %1920 = vmatpush.bf16.xpose.msra.mxu0 0
        %1921 = vmatpush.bf16.xpose.msra.mxu0 0
        %1922 = vmatpush.bf16.xpose.msra.mxu0 0
        %1923 = vmatpush.bf16.xpose.msra.mxu0 0
        %1924 = vmatpush.bf16.xpose.msra.mxu0 0
        %1925 = vmatpush.bf16.xpose.msra.mxu0 %v1175
        %1926 = vmatpush.bf16.xpose.msra.mxu0 %v1111
        %1927 = vmatmul.bf16.gmra.mxu0 %v534
        %v1928 = vpop.f32.mrf.mxu0
        %v1929 = vadd.f32 %v1916, %v1928
        %v1930 = vpop.f32.mrf.mxu0
        %1931 = vdwg.mxu0
        %1932 = vmatpush.bf16.xpose.msra.mxu0 0
        %1933 = vmatpush.bf16.xpose.msra.mxu0 0
        %1934 = vmatpush.bf16.xpose.msra.mxu0 0
        %1935 = vmatpush.bf16.xpose.msra.mxu0 0
        %1936 = vmatpush.bf16.xpose.msra.mxu0 0
        %1937 = vmatpush.bf16.xpose.msra.mxu0 0
        %1938 = vmatpush.bf16.xpose.msra.mxu0 %v1176
        %1939 = vmatpush.bf16.xpose.msra.mxu0 %v1112
        %1940 = vmatmul.bf16.gmra.mxu0 %v535
        %v1941 = vpop.f32.mrf.mxu0
        %v1942 = vadd.f32 %v1929, %v1941
        %v1943 = vpop.f32.mrf.mxu0
        %1944 = vdwg.mxu0
        %1945 = vmatpush.bf16.xpose.msra.mxu0 0
        %1946 = vmatpush.bf16.xpose.msra.mxu0 0
        %1947 = vmatpush.bf16.xpose.msra.mxu0 0
        %1948 = vmatpush.bf16.xpose.msra.mxu0 0
        %1949 = vmatpush.bf16.xpose.msra.mxu0 0
        %1950 = vmatpush.bf16.xpose.msra.mxu0 0
        %1951 = vmatpush.bf16.xpose.msra.mxu0 %v1177
        %1952 = vmatpush.bf16.xpose.msra.mxu0 %v1113
        %1953 = vmatmul.bf16.gmra.mxu0 %v536
        %v1954 = vpop.f32.mrf.mxu0
        %v1955 = vadd.f32 %v1942, %v1954
        %v1956 = vpop.f32.mrf.mxu0
        %1957 = vdwg.mxu0
        %1958 = vmatpush.bf16.xpose.msra.mxu0 0
        %1959 = vmatpush.bf16.xpose.msra.mxu0 0
        %1960 = vmatpush.bf16.xpose.msra.mxu0 0
        %1961 = vmatpush.bf16.xpose.msra.mxu0 0
        %1962 = vmatpush.bf16.xpose.msra.mxu0 0
        %1963 = vmatpush.bf16.xpose.msra.mxu0 0
        %1964 = vmatpush.bf16.xpose.msra.mxu0 %v1178
        %1965 = vmatpush.bf16.xpose.msra.mxu0 %v1114
        %1966 = vmatmul.bf16.gmra.mxu0 %v537
        %v1967 = vpop.f32.mrf.mxu0
        %v1968 = vadd.f32 %v1955, %v1967
        %v1969 = vpop.f32.mrf.mxu0
        %1970 = vdwg.mxu0
        %1971 = vmatpush.bf16.xpose.msra.mxu0 0
        %1972 = vmatpush.bf16.xpose.msra.mxu0 0
        %1973 = vmatpush.bf16.xpose.msra.mxu0 0
        %1974 = vmatpush.bf16.xpose.msra.mxu0 0
        %1975 = vmatpush.bf16.xpose.msra.mxu0 0
        %1976 = vmatpush.bf16.xpose.msra.mxu0 0
        %1977 = vmatpush.bf16.xpose.msra.mxu0 %v1179
        %1978 = vmatpush.bf16.xpose.msra.mxu0 %v1115
        %1979 = vmatmul.bf16.gmra.mxu0 %v538
        %v1980 = vpop.f32.mrf.mxu0
        %v1981 = vadd.f32 %v1968, %v1980
        %v1982 = vpop.f32.mrf.mxu0
        %1983 = vdwg.mxu0
        %1984 = vmatpush.bf16.xpose.msra.mxu0 0
        %1985 = vmatpush.bf16.xpose.msra.mxu0 0
        %1986 = vmatpush.bf16.xpose.msra.mxu0 0
        %1987 = vmatpush.bf16.xpose.msra.mxu0 0
        %1988 = vmatpush.bf16.xpose.msra.mxu0 0
        %1989 = vmatpush.bf16.xpose.msra.mxu0 0
        %1990 = vmatpush.bf16.xpose.msra.mxu0 %v1180
        %1991 = vmatpush.bf16.xpose.msra.mxu0 %v1116
        %1992 = vmatmul.bf16.gmra.mxu0 %v539
        %v1993 = vpop.f32.mrf.mxu0
        %v1994 = vadd.f32 %v1981, %v1993
        %v1995 = vpop.f32.mrf.mxu0
        %1996 = vdwg.mxu0
        %1997 = vmatpush.bf16.xpose.msra.mxu0 0
        %1998 = vmatpush.bf16.xpose.msra.mxu0 0
        %1999 = vmatpush.bf16.xpose.msra.mxu0 0
        %2000 = vmatpush.bf16.xpose.msra.mxu0 0
        %2001 = vmatpush.bf16.xpose.msra.mxu0 0
        %2002 = vmatpush.bf16.xpose.msra.mxu0 0
        %2003 = vmatpush.bf16.xpose.msra.mxu0 %v1181
        %2004 = vmatpush.bf16.xpose.msra.mxu0 %v1117
        %2005 = vmatmul.bf16.gmra.mxu0 %v540
        %v2006 = vpop.f32.mrf.mxu0
        %v2007 = vadd.f32 %v1994, %v2006
        %v2008 = vpop.f32.mrf.mxu0
        %2009 = vdwg.mxu0
        %2010 = vmatpush.bf16.xpose.msra.mxu0 0
        %2011 = vmatpush.bf16.xpose.msra.mxu0 0
        %2012 = vmatpush.bf16.xpose.msra.mxu0 0
        %2013 = vmatpush.bf16.xpose.msra.mxu0 0
        %2014 = vmatpush.bf16.xpose.msra.mxu0 0
        %2015 = vmatpush.bf16.xpose.msra.mxu0 0
        %2016 = vmatpush.bf16.xpose.msra.mxu0 %v1182
        %2017 = vmatpush.bf16.xpose.msra.mxu0 %v1118
        %2018 = vmatmul.bf16.gmra.mxu0 %v541
        %v2019 = vpop.f32.mrf.mxu0
        %v2020 = vadd.f32 %v2007, %v2019
        %v2021 = vpop.f32.mrf.mxu0
        %2022 = vdwg.mxu0
        %2023 = vmatpush.bf16.xpose.msra.mxu0 0
        %2024 = vmatpush.bf16.xpose.msra.mxu0 0
        %2025 = vmatpush.bf16.xpose.msra.mxu0 0
        %2026 = vmatpush.bf16.xpose.msra.mxu0 0
        %2027 = vmatpush.bf16.xpose.msra.mxu0 0
        %2028 = vmatpush.bf16.xpose.msra.mxu0 0
        %2029 = vmatpush.bf16.xpose.msra.mxu0 %v1183
        %2030 = vmatpush.bf16.xpose.msra.mxu0 %v1119
        %2031 = vmatmul.bf16.gmra.mxu0 %v542
        %v2032 = vpop.f32.mrf.mxu0
        %v2033 = vadd.f32 %v2020, %v2032
        %v2034 = vpop.f32.mrf.mxu0
        %2035 = vdwg.mxu0
        %2036 = vmatpush.bf16.xpose.msra.mxu0 0
        %2037 = vmatpush.bf16.xpose.msra.mxu0 0
        %2038 = vmatpush.bf16.xpose.msra.mxu0 0
        %2039 = vmatpush.bf16.xpose.msra.mxu0 0
        %2040 = vmatpush.bf16.xpose.msra.mxu0 0
        %2041 = vmatpush.bf16.xpose.msra.mxu0 0
        %2042 = vmatpush.bf16.xpose.msra.mxu0 %v1184
        %2043 = vmatpush.bf16.xpose.msra.mxu0 %v1120
        %2044 = vmatmul.bf16.gmra.mxu0 %v543
        %v2045 = vpop.f32.mrf.mxu0
        %v2046 = vadd.f32 %v2033, %v2045
        %v2047 = vpop.f32.mrf.mxu0
        %2048 = vdwg.mxu0
        %2049 = vmatpush.bf16.xpose.msra.mxu0 0
        %2050 = vmatpush.bf16.xpose.msra.mxu0 0
        %2051 = vmatpush.bf16.xpose.msra.mxu0 0
        %2052 = vmatpush.bf16.xpose.msra.mxu0 0
        %2053 = vmatpush.bf16.xpose.msra.mxu0 0
        %2054 = vmatpush.bf16.xpose.msra.mxu0 0
        %2055 = vmatpush.bf16.xpose.msra.mxu0 %v1185
        %2056 = vmatpush.bf16.xpose.msra.mxu0 %v1121
        %2057 = vmatmul.bf16.gmra.mxu0 %v544
        %v2058 = vpop.f32.mrf.mxu0
        %v2059 = vadd.f32 %v2046, %v2058
        %v2060 = vpop.f32.mrf.mxu0
        %2061 = vdwg.mxu0
        %2062 = vmatpush.bf16.xpose.msra.mxu0 0
        %2063 = vmatpush.bf16.xpose.msra.mxu0 0
        %2064 = vmatpush.bf16.xpose.msra.mxu0 0
        %2065 = vmatpush.bf16.xpose.msra.mxu0 0
        %2066 = vmatpush.bf16.xpose.msra.mxu0 0
        %2067 = vmatpush.bf16.xpose.msra.mxu0 0
        %2068 = vmatpush.bf16.xpose.msra.mxu0 %v1186
        %2069 = vmatpush.bf16.xpose.msra.mxu0 %v1122
        %2070 = vmatmul.bf16.gmra.mxu0 %v545
        %v2071 = vpop.f32.mrf.mxu0
        %v2072 = vadd.f32 %v2059, %v2071
        %v2073 = vpop.f32.mrf.mxu0
        %2074 = vdwg.mxu0
        %2075 = vmatpush.bf16.xpose.msra.mxu0 0
        %2076 = vmatpush.bf16.xpose.msra.mxu0 0
        %2077 = vmatpush.bf16.xpose.msra.mxu0 0
        %2078 = vmatpush.bf16.xpose.msra.mxu0 0
        %2079 = vmatpush.bf16.xpose.msra.mxu0 0
        %2080 = vmatpush.bf16.xpose.msra.mxu0 0
        %2081 = vmatpush.bf16.xpose.msra.mxu0 %v1187
        %2082 = vmatpush.bf16.xpose.msra.mxu0 %v1123
        %2083 = vmatmul.bf16.gmra.mxu0 %v546
        %v2084 = vpop.f32.mrf.mxu0
        %v2085 = vadd.f32 %v2072, %v2084
        %v2086 = vpop.f32.mrf.mxu0
        %2087 = vdwg.mxu0
        %2088 = vmatpush.bf16.xpose.msra.mxu0 0
        %2089 = vmatpush.bf16.xpose.msra.mxu0 0
        %2090 = vmatpush.bf16.xpose.msra.mxu0 0
        %2091 = vmatpush.bf16.xpose.msra.mxu0 0
        %2092 = vmatpush.bf16.xpose.msra.mxu0 0
        %2093 = vmatpush.bf16.xpose.msra.mxu0 0
        %2094 = vmatpush.bf16.xpose.msra.mxu0 %v1188
        %2095 = vmatpush.bf16.xpose.msra.mxu0 %v1124
        %2096 = vmatmul.bf16.gmra.mxu0 %v547
        %v2097 = vpop.f32.mrf.mxu0
        %v2098 = vadd.f32 %v2085, %v2097
        %v2099 = vpop.f32.mrf.mxu0
        %2100 = vdwg.mxu0
        %2101 = vmatpush.bf16.xpose.msra.mxu0 0
        %2102 = vmatpush.bf16.xpose.msra.mxu0 0
        %2103 = vmatpush.bf16.xpose.msra.mxu0 0
        %2104 = vmatpush.bf16.xpose.msra.mxu0 0
        %2105 = vmatpush.bf16.xpose.msra.mxu0 0
        %2106 = vmatpush.bf16.xpose.msra.mxu0 0
        %2107 = vmatpush.bf16.xpose.msra.mxu0 %v1189
        %2108 = vmatpush.bf16.xpose.msra.mxu0 %v1125
        %2109 = vmatmul.bf16.gmra.mxu0 %v548
        %v2110 = vpop.f32.mrf.mxu0
        %v2111 = vadd.f32 %v2098, %v2110
        %v2112 = vpop.f32.mrf.mxu0
        %2113 = vdwg.mxu0
        %2114 = vmatpush.bf16.xpose.msra.mxu0 0
        %2115 = vmatpush.bf16.xpose.msra.mxu0 0
        %2116 = vmatpush.bf16.xpose.msra.mxu0 0
        %2117 = vmatpush.bf16.xpose.msra.mxu0 0
        %2118 = vmatpush.bf16.xpose.msra.mxu0 0
        %2119 = vmatpush.bf16.xpose.msra.mxu0 0
        %2120 = vmatpush.bf16.xpose.msra.mxu0 %v1190
        %2121 = vmatpush.bf16.xpose.msra.mxu0 %v1126
        %2122 = vmatmul.bf16.gmra.mxu0 %v549
        %v2123 = vpop.f32.mrf.mxu0
        %v2124 = vadd.f32 %v2111, %v2123
        %v2125 = vpop.f32.mrf.mxu0
        %2126 = vdwg.mxu0
        %2127 = vmatpush.bf16.xpose.msra.mxu0 0
        %2128 = vmatpush.bf16.xpose.msra.mxu0 0
        %2129 = vmatpush.bf16.xpose.msra.mxu0 0
        %2130 = vmatpush.bf16.xpose.msra.mxu0 0
        %2131 = vmatpush.bf16.xpose.msra.mxu0 0
        %2132 = vmatpush.bf16.xpose.msra.mxu0 0
        %2133 = vmatpush.bf16.xpose.msra.mxu0 %v1191
        %2134 = vmatpush.bf16.xpose.msra.mxu0 %v1127
        %2135 = vmatmul.bf16.gmra.mxu0 %v550
        %v2136 = vpop.f32.mrf.mxu0
        %v2137 = vadd.f32 %v2124, %v2136
        %v2138 = vpop.f32.mrf.mxu0
        %2139 = vdwg.mxu0
        %2140 = vmatpush.bf16.xpose.msra.mxu0 0
        %2141 = vmatpush.bf16.xpose.msra.mxu0 0
        %2142 = vmatpush.bf16.xpose.msra.mxu0 0
        %2143 = vmatpush.bf16.xpose.msra.mxu0 0
        %2144 = vmatpush.bf16.xpose.msra.mxu0 0
        %2145 = vmatpush.bf16.xpose.msra.mxu0 0
        %2146 = vmatpush.bf16.xpose.msra.mxu0 %v1192
        %2147 = vmatpush.bf16.xpose.msra.mxu0 %v1128
        %2148 = vmatmul.bf16.gmra.mxu0 %v551
        %v2149 = vpop.f32.mrf.mxu0
        %v2150 = vadd.f32 %v2137, %v2149
        %v2151 = vpop.f32.mrf.mxu0
        %2152 = vdwg.mxu0
        %v2153 = vadd.f32 %v680, %v2150
        %vm2154 = vcmask 254976
        %2155 = vst.msk [vmem:[#allocation2] sm:$0x3] %vm2154, %v2153
        %p2156 = scmp.eq.s32.totalorder %s28, 1
        // Predicated region
        $region53: #{tpu_custom_call.1} parent=39 // pred_check
          %p2157 = pneg %p2156
        $region54: #{tpu_custom_call.1} parent=39 // pred_check_branch
          %2159 = sbr.rel (%p2157) target = $region56
        $region55: #{tpu_custom_call.1} parent=39 // pred_region
          %v2160 = vld [vmem:[#allocation2] sm:$0x3]
          %v2161 = vld [vmem:[%s2] sm:$0x1]
          %v2163 = vperm.slane %v2161, 0
          %v2165 = vadd.f32 %v2160, %v2163
          %vm2166 = vcmp.gt.f32.partialorder %v2165, 0.0
          %v2167 = vmul.f32 %v2165, 0.2
          %v2168 = vsel %vm2166, %v2165, %v2167
          %v2169 = vld [vmem:[%s3] sm:$0x1]
          %v2171 = vperm.slane %v2169, 0
          %v2173 = vmul.f32 %v2168, %v2171
          %v2174 = vsel %vm2154, %v2173, 0.0
          %2175 = vadd.xlane.f32.xlu0 %v2174
          %v2176 = vpop.xlane.xlu0 %2175
          %s2177 = sld [smem:[#allocation3]]
          %v2178 = vstv %s2177
          %v2179 = vadd.f32 %v2176, %v2178
          %v2180 = vxor.u32 %v2179, 2147483648
          %v2181 = vmul.f32 %v2180, 1.442695
          %v2182 = vpow.pop %v2181
          %v2183 = vadd.f32 %v2182, 1.0
          %v2184 = vrcp.pop %v2183
          %v2185 = vmul.f32 %v2183, %v2184
          %v2186 = vsub.f32 1.0, %v2185
          %v2187 = vmul.f32 %v2184, %v2186
          %v2188 = vadd.f32 %v2184, %v2187
          %vm2189 = vweird.f32 %v2183
          %vm2190 = vweird.f32 %v2184
          %vm2191 = vmor %vm2189, %vm2190
          %v2192 = vsel %vm2191, %v2184, %v2188
          %v2193 = vand.u32 2147483647, %v2183
          %vm2194 = vcmp.eq.f32.partialorder %v2193, 8.507059e+37
          %v2195 = vand.u32 %v2183, 2147483648
          %v2196 = vor.u32 1.1754944e-38, %v2195
          %v2197 = vsel %vm2194, %v2196, %v2192
          %v2198 = vmul.f32 1.0, %v2197
          %vm2199 = vcmask 1024
          %2200 = vst.msk [vmem:[%s303] sm:$0x3] %vm2199, %v2198
        $region56: #{tpu_custom_call.1} parent=39 // pred_fallthru
          _
        %p2201 = scmp.lt.s32.totalorder %s27, 0
        %s2202 = scalar_select %p2201, %s27, 0
        %s2203 = smul.addr %s2202, 2
        %s2204 = scalar_lea.vmem %s5, %s2203
        // Predicated region
        $region57: #{tpu_custom_call.1} parent=39 // pred_check
          %p2205 = pneg %p170
        $region58: #{tpu_custom_call.1} parent=39 // pred_check_branch
          %2207 = sbr.rel (%p2205) target = $region60
        $region59: #{tpu_custom_call.1} parent=39 // pred_region
          _
        $region60: #{tpu_custom_call.1} parent=39 // pred_fallthru
          _
        // Predicated region
        $region61: #{tpu_custom_call.1} parent=39 // pred_check
          %p2208 = pneg %p170
        $region62: #{tpu_custom_call.1} parent=39 // pred_check_branch
          %2210 = sbr.rel (%p2208) target = $region64
        $region63: #{tpu_custom_call.1} parent=39 // pred_region
          %p2211 = scmp.lt.s32.totalorder %s27, 0
          %s2212 = scalar_select %p2211, %s27, 0
          %s2213 = smul.addr %s2212, 2
          %s2214 = scalar_lea.vmem %s5, %s2213
        $region64: #{tpu_custom_call.1} parent=39 // pred_fallthru
          _
      $region40: #{tpu_custom_call.1} parent=5 // pred_fallthru
        _
      %p2215 = scmp.le.s32.totalorder 2, %s18
      // Predicated region
      $region65: #{tpu_custom_call.1} parent=5 // pred_check
        %p2216 = pneg %p2215
      $region66: #{tpu_custom_call.1} parent=5 // pred_check_branch
        %2218 = sbr.rel (%p2216) target = $region68
      $region67: #{tpu_custom_call.1} parent=5 // pred_region
        %s2219 = ssub.s32 %s18, 2
      $region68: #{tpu_custom_call.1} parent=5 // pred_fallthru
        _
    $region6: #{tpu_custom_call.1} parent=1 // loop_footer
      %s22 = sadd.s32 1, %s18
    $region7: #{tpu_custom_call.1} parent=1 // loop_footer_branch
      %17 = sbr.rel target = $region3
    $region8: #{tpu_custom_call.1} parent=1 // loop_exit
      _
    %2220 = vsyncpa [#allocation5], 1
    %s2221 = scalar_lea.sflag [#allocation5], 1
    %2222 = vsyncpa %s2221, 1
    %2223 = vsyncpa [#allocation7], 1
    %s2224 = scalar_lea.sflag [#allocation7], 1
    %2225 = vsyncpa %s2224, 1

</llo_original>
